<compile_context>
chip_gen: v7x
topology: tpu7x:2x2x1
jax: 0.10.0
libtpu: 0.0.40
codegen_flags: <defaults>
</compile_context>

<pallas_src>
import functools

import jax
import jax.numpy as jnp
import numpy as np
from jax.experimental import pallas as pl
from jax.experimental.pallas import tpu as pltpu


def lstm_block_kernel(x_ref, w_ref, m_ref, out_ref, *, B, T, D, H, S, O1):
    """Fused LSTMBlock forward; single grid step, everything resident in VMEM.

    x_ref  : [B, T*D]     batch-first input with time flattened into lanes
    w_ref  : [D+2H, 4H]   rows 0:D+H           = [wih^T ; whh^T] (gate weights)
                          rows D+H:D+2H, :O1   = w1^T (feature projection)
    m_ref  : [R, 4H]      row 0                : b_ih + b_hh
                          rows 1:1+B           : cols 0:H = h0, cols H:2H = c0
                          rows 1+B:1+B+S       : cols 0:O1 = out_bias,
                                                 cols O1:O1+T = w2
    out_ref: [B, S, O1]
    """
    w_all = w_ref[...]
    wg = w_all[0:D + H, :]                       # [D+H, 4H] fused gate weight
    w1 = w_all[D + H:D + 2 * H, 0:O1]            # [H, O1]

    m = m_ref[...]
    b = m[0:1, :]                                # [1, 4H]
    h = m[1:1 + B, 0:H]                          # [B, H]
    c = m[1:1 + B, H:2 * H]                      # [B, H]
    out_bias = m[1 + B:1 + B + S, 0:O1]          # [S, O1]
    w2 = m[1 + B:1 + B + S, O1:O1 + T]           # [S, T]

    # ReLU once on the whole input block (dropout p=0 is identity).
    x_all = jnp.maximum(x_ref[...], 0.0)         # [B, T*D]

    acc = jnp.zeros((B, S, O1), jnp.float32)

    # Fully unrolled recurrence (T is a small static constant) with the two
    # output projections fused into the loop.
    for t in range(T):
        xt = x_all[:, t * D:(t + 1) * D]                                   # [B, D]
        zin = jnp.concatenate([xt, h], axis=1)                             # [B, D+H]
        gates = jnp.dot(zin, wg, preferred_element_type=jnp.float32) + b   # [B, 4H]
        sig = jax.nn.sigmoid(gates)              # full-width: EUP slot is free
        tng = jnp.tanh(gates)
        i_g = sig[:, 0:H]
        f_g = sig[:, H:2 * H]
        g_g = tng[:, 2 * H:3 * H]
        o_g = sig[:, 3 * H:4 * H]
        c = f_g * c + i_g * g_g
        h = o_g * jnp.tanh(c)
        # Fused Linear(H->O1) followed by the t-th column of Linear(T->S).
        p = jnp.dot(h, w1, preferred_element_type=jnp.float32)             # [B, O1]
        w2_t = w2[:, t:t + 1]                                              # [S, 1]
        acc = acc + p[:, None, :] * w2_t[None, :, :]                       # [B, S, O1]

    out_ref[...] = (acc + out_bias[None, :, :]).astype(out_ref.dtype)


def lstm_block_forward(x, h0, c0, wih_t, whh_t, b, w1t, b1, w2, b2):
    """x: [B, T, D] batch-first. Returns [B, S, O1]."""
    B, T, D = x.shape
    H = h0.shape[-1]
    O1 = w1t.shape[-1]
    S = w2.shape[0]
    G = 4 * H

    # Flatten time into lanes (pure reshape, no transpose / extra HBM traffic).
    x2 = x.reshape(B, T * D)

    # Weight slab: gate weights stacked with the (zero-padded) projection weight.
    w_slab = jnp.concatenate(
        [wih_t, whh_t, jnp.pad(w1t, ((0, 0), (0, G - O1)))], axis=0)       # [D+2H, 4H]

    # Misc slab: combined bias row, initial-state rows, fused output-bias / w2 rows.
    # out_bias folds b1 (via row-sums of w2) and b2 into a single [S, O1] term.
    out_bias = (jnp.sum(w2, axis=1, keepdims=True) * b1.reshape(1, O1)
                + b2.reshape(S, 1))                                        # [S, O1]
    row_b = b.reshape(1, G)
    rows_hc = jnp.concatenate(
        [h0, c0, jnp.zeros((B, G - 2 * H), jnp.float32)], axis=1)          # [B, 4H]
    rows_ow = jnp.concatenate(
        [out_bias, w2, jnp.zeros((S, G - O1 - T), jnp.float32)], axis=1)   # [S, 4H]
    m_slab = jnp.concatenate([row_b, rows_hc, rows_ow], axis=0)            # [1+B+S, 4H]
    rows = 1 + B + S
    m_rows = ((rows + 7) // 8) * 8
    m_slab = jnp.pad(m_slab, ((0, m_rows - rows), (0, 0)))                 # [8, 4H]

    full = lambda shape: pl.BlockSpec(shape, lambda i: (0,) * len(shape))

    kernel = functools.partial(lstm_block_kernel, B=B, T=T, D=D, H=H, S=S, O1=O1)
    return pl.pallas_call(
        kernel,
        out_shape=jax.ShapeDtypeStruct((B, S, O1), jnp.float32),
        grid=(1,),
        in_specs=[
            full((B, T * D)),          # x (ReLU'd in-kernel)
            full((D + 2 * H, G)),      # weight slab
            full((m_rows, G)),         # misc slab
        ],
        out_specs=full((B, S, O1)),
        compiler_params=pltpu.CompilerParams(
            dimension_semantics=("arbitrary",)),
    )(x2, w_slab, m_slab)


def reference_forward(x, h0, c0, wih_t, whh_t, b, w1t, b1, w2, b2):
    """Pure-JAX reference implementing the same math as the PyTorch module."""
    xr = jnp.maximum(x, 0.0)
    H = h0.shape[-1]

    def step(carry, xt):
        h, c = carry
        gates = xt @ wih_t + h @ whh_t + b
        i_g = jax.nn.sigmoid(gates[:, :H])
        f_g = jax.nn.sigmoid(gates[:, H:2 * H])
        g_g = jnp.tanh(gates[:, 2 * H:3 * H])
        o_g = jax.nn.sigmoid(gates[:, 3 * H:])
        c = f_g * c + i_g * g_g
        h = o_g * jnp.tanh(c)
        return (h, c), h

    _, hseq_tm = jax.lax.scan(step, (h0, c0), jnp.transpose(xr, (1, 0, 2)))
    hseq = jnp.transpose(hseq_tm, (1, 0, 2))                              # [B, T, H]
    proj = hseq @ w1t + b1                                                # [B, T, O1]
    out = jnp.einsum('bto,st->bso', proj, w2) + b2.reshape(1, -1, 1)      # [B, S, O1]
    return out


def xavier_uniform(key, shape, fan_in, fan_out):
    a = np.sqrt(6.0 / (fan_in + fan_out))
    return jax.random.uniform(key, shape, jnp.float32, -a, a)


if __name__ == "__main__":
    # Module hyperparameters.
    B, T, D = 2, 8, 8              # batch, input_length, input_dimension
    H = 32                         # hidden_dimension
    O1 = 16                        # output_dimension
    S = 4                          # output_length

    key = jax.random.PRNGKey(0)
    keys = jax.random.split(key, 12)

    # Deterministic synthetic parameters (xavier-style weights, small biases).
    wih = xavier_uniform(keys[0], (4 * H, D), D, 4 * H)       # LSTM weight_ih_l0
    whh = xavier_uniform(keys[1], (4 * H, H), H, 4 * H)       # LSTM weight_hh_l0
    b_ih = jax.random.uniform(keys[2], (4 * H,), jnp.float32, -0.1, 0.1)
    b_hh = jax.random.uniform(keys[3], (4 * H,), jnp.float32, -0.1, 0.1)
    w1 = xavier_uniform(keys[4], (O1, H), H, O1)              # output_function_1 weight
    b1 = jax.random.uniform(keys[5], (O1,), jnp.float32, -0.1, 0.1)
    w2 = xavier_uniform(keys[6], (S, T), T, S)                # output_function_2 weight
    b2 = jax.random.uniform(keys[7], (S,), jnp.float32, -0.1, 0.1)

    # Random initial hidden/cell states (mirrors torch.randn in _init_hidden_layers).
    h0 = jax.random.normal(keys[8], (B, H), jnp.float32)
    c0 = jax.random.normal(keys[9], (B, H), jnp.float32)

    # Input.
    x = jax.random.normal(keys[10], (B, T, D), jnp.float32)

    # Kernel-friendly parameter layouts.
    wih_t = wih.T                                             # [D, 4H]
    whh_t = whh.T                                             # [H, 4H]
    b_comb = (b_ih + b_hh).reshape(1, 4 * H)                  # [1, 4H]
    w1t = w1.T                                                # [H, O1]
    b1_r = b1.reshape(1, O1)                                  # [1, O1]
    b2_r = b2.reshape(S, 1)                                   # [S, 1]

    fwd = jax.jit(lstm_block_forward)
    out = fwd(x, h0, c0, wih_t, whh_t, b_comb, w1t, b1_r, w2, b2_r)
    out = jax.block_until_ready(out)

    ref = reference_forward(x, h0, c0, wih_t, whh_t, b_comb, w1t, b1_r, w2, b2_r)
    ref = jax.block_until_ready(ref)

    assert out.shape == (B, S, O1), out.shape
    np.testing.assert_allclose(np.asarray(out), np.asarray(ref), rtol=1e-4, atol=1e-4)

    print("KERNEL_OK")
</pallas_src>

<mosaic_0001>
module attributes {stable_mosaic.version = 11 : i64} {
  func.func @lstm_block_kernel(%arg0: i32, %arg1: memref<2x64xf32, #tpu.memory_space<vmem>>, %arg2: memref<72x128xf32, #tpu.memory_space<vmem>>, %arg3: memref<8x128xf32, #tpu.memory_space<vmem>>, %arg4: memref<2x4x16xf32, #tpu.memory_space<vmem>>) attributes {dimension_semantics = [#tpu.dimension_semantics<arbitrary>], iteration_bounds = array<i64: 1>, scalar_prefetch = 0 : i64, scratch_operands = 0 : i64, tpu.core_type = #tpu.core_type<tc>, window_params = [{pipeline_mode = #tpu.pipeline_mode<synchronous>, transform_indices = @transform_0, window_bounds = array<i64: 2, 64>}, {pipeline_mode = #tpu.pipeline_mode<synchronous>, transform_indices = @transform_1, window_bounds = array<i64: 72, 128>}, {pipeline_mode = #tpu.pipeline_mode<synchronous>, transform_indices = @transform_2, window_bounds = array<i64: 8, 128>}, {pipeline_mode = #tpu.pipeline_mode<synchronous>, transform_indices = @transform_3, window_bounds = array<i64: 2, 4, 16>}]} {
    %c0 = arith.constant 0 : index
    %c0_0 = arith.constant 0 : index
    %0 = vector.load %arg2[%c0, %c0_0] : memref<72x128xf32, #tpu.memory_space<vmem>>, vector<72x128xf32>
    %1 = vector.extract_strided_slice %0 {offsets = [0, 0], sizes = [40, 128], strides = [1, 1]} : vector<72x128xf32> to vector<40x128xf32>
    %2 = vector.extract_strided_slice %0 {offsets = [40, 0], sizes = [32, 16], strides = [1, 1]} : vector<72x128xf32> to vector<32x16xf32>
    %c0_1 = arith.constant 0 : index
    %c0_2 = arith.constant 0 : index
    %3 = vector.load %arg3[%c0_1, %c0_2] : memref<8x128xf32, #tpu.memory_space<vmem>>, vector<8x128xf32>
    %4 = vector.extract_strided_slice %3 {offsets = [0, 0], sizes = [1, 128], strides = [1, 1]} : vector<8x128xf32> to vector<1x128xf32>
    %5 = vector.extract_strided_slice %3 {offsets = [1, 0], sizes = [2, 32], strides = [1, 1]} : vector<8x128xf32> to vector<2x32xf32>
    %6 = vector.extract_strided_slice %3 {offsets = [1, 32], sizes = [2, 32], strides = [1, 1]} : vector<8x128xf32> to vector<2x32xf32>
    %7 = vector.extract_strided_slice %3 {offsets = [3, 0], sizes = [4, 16], strides = [1, 1]} : vector<8x128xf32> to vector<4x16xf32>
    %8 = vector.extract_strided_slice %3 {offsets = [3, 16], sizes = [4, 8], strides = [1, 1]} : vector<8x128xf32> to vector<4x8xf32>
    %c0_3 = arith.constant 0 : index
    %c0_4 = arith.constant 0 : index
    %9 = vector.load %arg1[%c0_3, %c0_4] : memref<2x64xf32, #tpu.memory_space<vmem>>, vector<2x64xf32>
    %cst = arith.constant 0.000000e+00 : f32
    %10 = vector.broadcast %cst : f32 to vector<2x64xf32>
    %11 = arith.maximumf %9, %10 : vector<2x64xf32>
    %cst_5 = arith.constant 0.000000e+00 : f32
    %12 = vector.broadcast %cst_5 : f32 to vector<2x4x16xf32>
    %13 = vector.extract_strided_slice %11 {offsets = [0, 0], sizes = [2, 8], strides = [1, 1]} : vector<2x64xf32> to vector<2x8xf32>
    %14 = tpu.concatenate %13, %5 in 1 : vector<2x8xf32>, vector<2x32xf32> -> vector<2x40xf32>
    %cst_6 = arith.constant dense<0.000000e+00> : vector<2x128xf32>
    %15 = tpu.matmul %14, %1, %cst_6 {dimension_numbers = #tpu.dot_dimension_numbers<[1], [0], [0], [1], [0, 0, 1, 1], [], []>} : vector<2x40xf32>, vector<40x128xf32>, vector<2x128xf32> -> vector<2x128xf32>
    %16 = vector.broadcast %4 : vector<1x128xf32> to vector<2x128xf32>
    %17 = arith.addf %15, %16 : vector<2x128xf32>
    %18 = arith.negf %17 : vector<2x128xf32>
    %19 = math.exp %18 : vector<2x128xf32>
    %cst_7 = arith.constant 1.000000e+00 : f32
    %20 = vector.broadcast %cst_7 : f32 to vector<2x128xf32>
    %21 = arith.addf %20, %19 : vector<2x128xf32>
    %22 = arith.divf %20, %21 : vector<2x128xf32>
    %23 = math.tanh %17 : vector<2x128xf32>
    %24 = vector.extract_strided_slice %22 {offsets = [0, 0], sizes = [2, 32], strides = [1, 1]} : vector<2x128xf32> to vector<2x32xf32>
    %25 = vector.extract_strided_slice %22 {offsets = [0, 32], sizes = [2, 32], strides = [1, 1]} : vector<2x128xf32> to vector<2x32xf32>
    %26 = vector.extract_strided_slice %23 {offsets = [0, 64], sizes = [2, 32], strides = [1, 1]} : vector<2x128xf32> to vector<2x32xf32>
    %27 = vector.extract_strided_slice %22 {offsets = [0, 96], sizes = [2, 32], strides = [1, 1]} : vector<2x128xf32> to vector<2x32xf32>
    %28 = arith.mulf %25, %6 : vector<2x32xf32>
    %29 = arith.mulf %24, %26 : vector<2x32xf32>
    %30 = arith.addf %28, %29 : vector<2x32xf32>
    %31 = math.tanh %30 : vector<2x32xf32>
    %32 = arith.mulf %27, %31 : vector<2x32xf32>
    %cst_8 = arith.constant dense<0.000000e+00> : vector<2x16xf32>
    %33 = tpu.matmul %32, %2, %cst_8 {dimension_numbers = #tpu.dot_dimension_numbers<[1], [0], [0], [1], [0, 0, 1, 1], [], []>} : vector<2x32xf32>, vector<32x16xf32>, vector<2x16xf32> -> vector<2x16xf32>
    %34 = vector.extract_strided_slice %8 {offsets = [0, 0], sizes = [4, 1], strides = [1, 1]} : vector<4x8xf32> to vector<4x1xf32>
    %35 = vector.shape_cast %33 : vector<2x16xf32> to vector<2x1x16xf32>
    %36 = vector.shape_cast %34 : vector<4x1xf32> to vector<1x4x1xf32>
    %37 = vector.broadcast %35 : vector<2x1x16xf32> to vector<2x4x16xf32>
    %38 = vector.broadcast %36 : vector<1x4x1xf32> to vector<2x4x16xf32>
    %39 = arith.mulf %37, %38 : vector<2x4x16xf32>
    %40 = arith.addf %12, %39 : vector<2x4x16xf32>
    %41 = vector.extract_strided_slice %11 {offsets = [0, 8], sizes = [2, 8], strides = [1, 1]} : vector<2x64xf32> to vector<2x8xf32>
    %42 = tpu.concatenate %41, %32 in 1 : vector<2x8xf32>, vector<2x32xf32> -> vector<2x40xf32>
    %cst_9 = arith.constant dense<0.000000e+00> : vector<2x128xf32>
    %43 = tpu.matmul %42, %1, %cst_9 {dimension_numbers = #tpu.dot_dimension_numbers<[1], [0], [0], [1], [0, 0, 1, 1], [], []>} : vector<2x40xf32>, vector<40x128xf32>, vector<2x128xf32> -> vector<2x128xf32>
    %44 = vector.broadcast %4 : vector<1x128xf32> to vector<2x128xf32>
    %45 = arith.addf %43, %44 : vector<2x128xf32>
    %46 = arith.negf %45 : vector<2x128xf32>
    %47 = math.exp %46 : vector<2x128xf32>
    %cst_10 = arith.constant 1.000000e+00 : f32
    %48 = vector.broadcast %cst_10 : f32 to vector<2x128xf32>
    %49 = arith.addf %48, %47 : vector<2x128xf32>
    %50 = arith.divf %48, %49 : vector<2x128xf32>
    %51 = math.tanh %45 : vector<2x128xf32>
    %52 = vector.extract_strided_slice %50 {offsets = [0, 0], sizes = [2, 32], strides = [1, 1]} : vector<2x128xf32> to vector<2x32xf32>
    %53 = vector.extract_strided_slice %50 {offsets = [0, 32], sizes = [2, 32], strides = [1, 1]} : vector<2x128xf32> to vector<2x32xf32>
    %54 = vector.extract_strided_slice %51 {offsets = [0, 64], sizes = [2, 32], strides = [1, 1]} : vector<2x128xf32> to vector<2x32xf32>
    %55 = vector.extract_strided_slice %50 {offsets = [0, 96], sizes = [2, 32], strides = [1, 1]} : vector<2x128xf32> to vector<2x32xf32>
    %56 = arith.mulf %53, %30 : vector<2x32xf32>
    %57 = arith.mulf %52, %54 : vector<2x32xf32>
    %58 = arith.addf %56, %57 : vector<2x32xf32>
    %59 = math.tanh %58 : vector<2x32xf32>
    %60 = arith.mulf %55, %59 : vector<2x32xf32>
    %cst_11 = arith.constant dense<0.000000e+00> : vector<2x16xf32>
    %61 = tpu.matmul %60, %2, %cst_11 {dimension_numbers = #tpu.dot_dimension_numbers<[1], [0], [0], [1], [0, 0, 1, 1], [], []>} : vector<2x32xf32>, vector<32x16xf32>, vector<2x16xf32> -> vector<2x16xf32>
    %62 = vector.extract_strided_slice %8 {offsets = [0, 1], sizes = [4, 1], strides = [1, 1]} : vector<4x8xf32> to vector<4x1xf32>
    %63 = vector.shape_cast %61 : vector<2x16xf32> to vector<2x1x16xf32>
    %64 = vector.shape_cast %62 : vector<4x1xf32> to vector<1x4x1xf32>
    %65 = vector.broadcast %63 : vector<2x1x16xf32> to vector<2x4x16xf32>
    %66 = vector.broadcast %64 : vector<1x4x1xf32> to vector<2x4x16xf32>
    %67 = arith.mulf %65, %66 : vector<2x4x16xf32>
    %68 = arith.addf %40, %67 : vector<2x4x16xf32>
    %69 = vector.extract_strided_slice %11 {offsets = [0, 16], sizes = [2, 8], strides = [1, 1]} : vector<2x64xf32> to vector<2x8xf32>
    %70 = tpu.concatenate %69, %60 in 1 : vector<2x8xf32>, vector<2x32xf32> -> vector<2x40xf32>
    %cst_12 = arith.constant dense<0.000000e+00> : vector<2x128xf32>
    %71 = tpu.matmul %70, %1, %cst_12 {dimension_numbers = #tpu.dot_dimension_numbers<[1], [0], [0], [1], [0, 0, 1, 1], [], []>} : vector<2x40xf32>, vector<40x128xf32>, vector<2x128xf32> -> vector<2x128xf32>
    %72 = vector.broadcast %4 : vector<1x128xf32> to vector<2x128xf32>
    %73 = arith.addf %71, %72 : vector<2x128xf32>
    %74 = arith.negf %73 : vector<2x128xf32>
    %75 = math.exp %74 : vector<2x128xf32>
    %cst_13 = arith.constant 1.000000e+00 : f32
    %76 = vector.broadcast %cst_13 : f32 to vector<2x128xf32>
    %77 = arith.addf %76, %75 : vector<2x128xf32>
    %78 = arith.divf %76, %77 : vector<2x128xf32>
    %79 = math.tanh %73 : vector<2x128xf32>
    %80 = vector.extract_strided_slice %78 {offsets = [0, 0], sizes = [2, 32], strides = [1, 1]} : vector<2x128xf32> to vector<2x32xf32>
    %81 = vector.extract_strided_slice %78 {offsets = [0, 32], sizes = [2, 32], strides = [1, 1]} : vector<2x128xf32> to vector<2x32xf32>
    %82 = vector.extract_strided_slice %79 {offsets = [0, 64], sizes = [2, 32], strides = [1, 1]} : vector<2x128xf32> to vector<2x32xf32>
    %83 = vector.extract_strided_slice %78 {offsets = [0, 96], sizes = [2, 32], strides = [1, 1]} : vector<2x128xf32> to vector<2x32xf32>
    %84 = arith.mulf %81, %58 : vector<2x32xf32>
    %85 = arith.mulf %80, %82 : vector<2x32xf32>
    %86 = arith.addf %84, %85 : vector<2x32xf32>
    %87 = math.tanh %86 : vector<2x32xf32>
    %88 = arith.mulf %83, %87 : vector<2x32xf32>
    %cst_14 = arith.constant dense<0.000000e+00> : vector<2x16xf32>
    %89 = tpu.matmul %88, %2, %cst_14 {dimension_numbers = #tpu.dot_dimension_numbers<[1], [0], [0], [1], [0, 0, 1, 1], [], []>} : vector<2x32xf32>, vector<32x16xf32>, vector<2x16xf32> -> vector<2x16xf32>
    %90 = vector.extract_strided_slice %8 {offsets = [0, 2], sizes = [4, 1], strides = [1, 1]} : vector<4x8xf32> to vector<4x1xf32>
    %91 = vector.shape_cast %89 : vector<2x16xf32> to vector<2x1x16xf32>
    %92 = vector.shape_cast %90 : vector<4x1xf32> to vector<1x4x1xf32>
    %93 = vector.broadcast %91 : vector<2x1x16xf32> to vector<2x4x16xf32>
    %94 = vector.broadcast %92 : vector<1x4x1xf32> to vector<2x4x16xf32>
    %95 = arith.mulf %93, %94 : vector<2x4x16xf32>
    %96 = arith.addf %68, %95 : vector<2x4x16xf32>
    %97 = vector.extract_strided_slice %11 {offsets = [0, 24], sizes = [2, 8], strides = [1, 1]} : vector<2x64xf32> to vector<2x8xf32>
    %98 = tpu.concatenate %97, %88 in 1 : vector<2x8xf32>, vector<2x32xf32> -> vector<2x40xf32>
    %cst_15 = arith.constant dense<0.000000e+00> : vector<2x128xf32>
    %99 = tpu.matmul %98, %1, %cst_15 {dimension_numbers = #tpu.dot_dimension_numbers<[1], [0], [0], [1], [0, 0, 1, 1], [], []>} : vector<2x40xf32>, vector<40x128xf32>, vector<2x128xf32> -> vector<2x128xf32>
    %100 = vector.broadcast %4 : vector<1x128xf32> to vector<2x128xf32>
    %101 = arith.addf %99, %100 : vector<2x128xf32>
    %102 = arith.negf %101 : vector<2x128xf32>
    %103 = math.exp %102 : vector<2x128xf32>
    %cst_16 = arith.constant 1.000000e+00 : f32
    %104 = vector.broadcast %cst_16 : f32 to vector<2x128xf32>
    %105 = arith.addf %104, %103 : vector<2x128xf32>
    %106 = arith.divf %104, %105 : vector<2x128xf32>
    %107 = math.tanh %101 : vector<2x128xf32>
    %108 = vector.extract_strided_slice %106 {offsets = [0, 0], sizes = [2, 32], strides = [1, 1]} : vector<2x128xf32> to vector<2x32xf32>
    %109 = vector.extract_strided_slice %106 {offsets = [0, 32], sizes = [2, 32], strides = [1, 1]} : vector<2x128xf32> to vector<2x32xf32>
    %110 = vector.extract_strided_slice %107 {offsets = [0, 64], sizes = [2, 32], strides = [1, 1]} : vector<2x128xf32> to vector<2x32xf32>
    %111 = vector.extract_strided_slice %106 {offsets = [0, 96], sizes = [2, 32], strides = [1, 1]} : vector<2x128xf32> to vector<2x32xf32>
    %112 = arith.mulf %109, %86 : vector<2x32xf32>
    %113 = arith.mulf %108, %110 : vector<2x32xf32>
    %114 = arith.addf %112, %113 : vector<2x32xf32>
    %115 = math.tanh %114 : vector<2x32xf32>
    %116 = arith.mulf %111, %115 : vector<2x32xf32>
    %cst_17 = arith.constant dense<0.000000e+00> : vector<2x16xf32>
    %117 = tpu.matmul %116, %2, %cst_17 {dimension_numbers = #tpu.dot_dimension_numbers<[1], [0], [0], [1], [0, 0, 1, 1], [], []>} : vector<2x32xf32>, vector<32x16xf32>, vector<2x16xf32> -> vector<2x16xf32>
    %118 = vector.extract_strided_slice %8 {offsets = [0, 3], sizes = [4, 1], strides = [1, 1]} : vector<4x8xf32> to vector<4x1xf32>
    %119 = vector.shape_cast %117 : vector<2x16xf32> to vector<2x1x16xf32>
    %120 = vector.shape_cast %118 : vector<4x1xf32> to vector<1x4x1xf32>
    %121 = vector.broadcast %119 : vector<2x1x16xf32> to vector<2x4x16xf32>
    %122 = vector.broadcast %120 : vector<1x4x1xf32> to vector<2x4x16xf32>
    %123 = arith.mulf %121, %122 : vector<2x4x16xf32>
    %124 = arith.addf %96, %123 : vector<2x4x16xf32>
    %125 = vector.extract_strided_slice %11 {offsets = [0, 32], sizes = [2, 8], strides = [1, 1]} : vector<2x64xf32> to vector<2x8xf32>
    %126 = tpu.concatenate %125, %116 in 1 : vector<2x8xf32>, vector<2x32xf32> -> vector<2x40xf32>
    %cst_18 = arith.constant dense<0.000000e+00> : vector<2x128xf32>
    %127 = tpu.matmul %126, %1, %cst_18 {dimension_numbers = #tpu.dot_dimension_numbers<[1], [0], [0], [1], [0, 0, 1, 1], [], []>} : vector<2x40xf32>, vector<40x128xf32>, vector<2x128xf32> -> vector<2x128xf32>
    %128 = vector.broadcast %4 : vector<1x128xf32> to vector<2x128xf32>
    %129 = arith.addf %127, %128 : vector<2x128xf32>
    %130 = arith.negf %129 : vector<2x128xf32>
    %131 = math.exp %130 : vector<2x128xf32>
    %cst_19 = arith.constant 1.000000e+00 : f32
    %132 = vector.broadcast %cst_19 : f32 to vector<2x128xf32>
    %133 = arith.addf %132, %131 : vector<2x128xf32>
    %134 = arith.divf %132, %133 : vector<2x128xf32>
    %135 = math.tanh %129 : vector<2x128xf32>
    %136 = vector.extract_strided_slice %134 {offsets = [0, 0], sizes = [2, 32], strides = [1, 1]} : vector<2x128xf32> to vector<2x32xf32>
    %137 = vector.extract_strided_slice %134 {offsets = [0, 32], sizes = [2, 32], strides = [1, 1]} : vector<2x128xf32> to vector<2x32xf32>
    %138 = vector.extract_strided_slice %135 {offsets = [0, 64], sizes = [2, 32], strides = [1, 1]} : vector<2x128xf32> to vector<2x32xf32>
    %139 = vector.extract_strided_slice %134 {offsets = [0, 96], sizes = [2, 32], strides = [1, 1]} : vector<2x128xf32> to vector<2x32xf32>
    %140 = arith.mulf %137, %114 : vector<2x32xf32>
    %141 = arith.mulf %136, %138 : vector<2x32xf32>
    %142 = arith.addf %140, %141 : vector<2x32xf32>
    %143 = math.tanh %142 : vector<2x32xf32>
    %144 = arith.mulf %139, %143 : vector<2x32xf32>
    %cst_20 = arith.constant dense<0.000000e+00> : vector<2x16xf32>
    %145 = tpu.matmul %144, %2, %cst_20 {dimension_numbers = #tpu.dot_dimension_numbers<[1], [0], [0], [1], [0, 0, 1, 1], [], []>} : vector<2x32xf32>, vector<32x16xf32>, vector<2x16xf32> -> vector<2x16xf32>
    %146 = vector.extract_strided_slice %8 {offsets = [0, 4], sizes = [4, 1], strides = [1, 1]} : vector<4x8xf32> to vector<4x1xf32>
    %147 = vector.shape_cast %145 : vector<2x16xf32> to vector<2x1x16xf32>
    %148 = vector.shape_cast %146 : vector<4x1xf32> to vector<1x4x1xf32>
    %149 = vector.broadcast %147 : vector<2x1x16xf32> to vector<2x4x16xf32>
    %150 = vector.broadcast %148 : vector<1x4x1xf32> to vector<2x4x16xf32>
    %151 = arith.mulf %149, %150 : vector<2x4x16xf32>
    %152 = arith.addf %124, %151 : vector<2x4x16xf32>
    %153 = vector.extract_strided_slice %11 {offsets = [0, 40], sizes = [2, 8], strides = [1, 1]} : vector<2x64xf32> to vector<2x8xf32>
    %154 = tpu.concatenate %153, %144 in 1 : vector<2x8xf32>, vector<2x32xf32> -> vector<2x40xf32>
    %cst_21 = arith.constant dense<0.000000e+00> : vector<2x128xf32>
    %155 = tpu.matmul %154, %1, %cst_21 {dimension_numbers = #tpu.dot_dimension_numbers<[1], [0], [0], [1], [0, 0, 1, 1], [], []>} : vector<2x40xf32>, vector<40x128xf32>, vector<2x128xf32> -> vector<2x128xf32>
    %156 = vector.broadcast %4 : vector<1x128xf32> to vector<2x128xf32>
    %157 = arith.addf %155, %156 : vector<2x128xf32>
    %158 = arith.negf %157 : vector<2x128xf32>
    %159 = math.exp %158 : vector<2x128xf32>
    %cst_22 = arith.constant 1.000000e+00 : f32
    %160 = vector.broadcast %cst_22 : f32 to vector<2x128xf32>
    %161 = arith.addf %160, %159 : vector<2x128xf32>
    %162 = arith.divf %160, %161 : vector<2x128xf32>
    %163 = math.tanh %157 : vector<2x128xf32>
    %164 = vector.extract_strided_slice %162 {offsets = [0, 0], sizes = [2, 32], strides = [1, 1]} : vector<2x128xf32> to vector<2x32xf32>
    %165 = vector.extract_strided_slice %162 {offsets = [0, 32], sizes = [2, 32], strides = [1, 1]} : vector<2x128xf32> to vector<2x32xf32>
    %166 = vector.extract_strided_slice %163 {offsets = [0, 64], sizes = [2, 32], strides = [1, 1]} : vector<2x128xf32> to vector<2x32xf32>
    %167 = vector.extract_strided_slice %162 {offsets = [0, 96], sizes = [2, 32], strides = [1, 1]} : vector<2x128xf32> to vector<2x32xf32>
    %168 = arith.mulf %165, %142 : vector<2x32xf32>
    %169 = arith.mulf %164, %166 : vector<2x32xf32>
    %170 = arith.addf %168, %169 : vector<2x32xf32>
    %171 = math.tanh %170 : vector<2x32xf32>
    %172 = arith.mulf %167, %171 : vector<2x32xf32>
    %cst_23 = arith.constant dense<0.000000e+00> : vector<2x16xf32>
    %173 = tpu.matmul %172, %2, %cst_23 {dimension_numbers = #tpu.dot_dimension_numbers<[1], [0], [0], [1], [0, 0, 1, 1], [], []>} : vector<2x32xf32>, vector<32x16xf32>, vector<2x16xf32> -> vector<2x16xf32>
    %174 = vector.extract_strided_slice %8 {offsets = [0, 5], sizes = [4, 1], strides = [1, 1]} : vector<4x8xf32> to vector<4x1xf32>
    %175 = vector.shape_cast %173 : vector<2x16xf32> to vector<2x1x16xf32>
    %176 = vector.shape_cast %174 : vector<4x1xf32> to vector<1x4x1xf32>
    %177 = vector.broadcast %175 : vector<2x1x16xf32> to vector<2x4x16xf32>
    %178 = vector.broadcast %176 : vector<1x4x1xf32> to vector<2x4x16xf32>
    %179 = arith.mulf %177, %178 : vector<2x4x16xf32>
    %180 = arith.addf %152, %179 : vector<2x4x16xf32>
    %181 = vector.extract_strided_slice %11 {offsets = [0, 48], sizes = [2, 8], strides = [1, 1]} : vector<2x64xf32> to vector<2x8xf32>
    %182 = tpu.concatenate %181, %172 in 1 : vector<2x8xf32>, vector<2x32xf32> -> vector<2x40xf32>
    %cst_24 = arith.constant dense<0.000000e+00> : vector<2x128xf32>
    %183 = tpu.matmul %182, %1, %cst_24 {dimension_numbers = #tpu.dot_dimension_numbers<[1], [0], [0], [1], [0, 0, 1, 1], [], []>} : vector<2x40xf32>, vector<40x128xf32>, vector<2x128xf32> -> vector<2x128xf32>
    %184 = vector.broadcast %4 : vector<1x128xf32> to vector<2x128xf32>
    %185 = arith.addf %183, %184 : vector<2x128xf32>
    %186 = arith.negf %185 : vector<2x128xf32>
    %187 = math.exp %186 : vector<2x128xf32>
    %cst_25 = arith.constant 1.000000e+00 : f32
    %188 = vector.broadcast %cst_25 : f32 to vector<2x128xf32>
    %189 = arith.addf %188, %187 : vector<2x128xf32>
    %190 = arith.divf %188, %189 : vector<2x128xf32>
    %191 = math.tanh %185 : vector<2x128xf32>
    %192 = vector.extract_strided_slice %190 {offsets = [0, 0], sizes = [2, 32], strides = [1, 1]} : vector<2x128xf32> to vector<2x32xf32>
    %193 = vector.extract_strided_slice %190 {offsets = [0, 32], sizes = [2, 32], strides = [1, 1]} : vector<2x128xf32> to vector<2x32xf32>
    %194 = vector.extract_strided_slice %191 {offsets = [0, 64], sizes = [2, 32], strides = [1, 1]} : vector<2x128xf32> to vector<2x32xf32>
    %195 = vector.extract_strided_slice %190 {offsets = [0, 96], sizes = [2, 32], strides = [1, 1]} : vector<2x128xf32> to vector<2x32xf32>
    %196 = arith.mulf %193, %170 : vector<2x32xf32>
    %197 = arith.mulf %192, %194 : vector<2x32xf32>
    %198 = arith.addf %196, %197 : vector<2x32xf32>
    %199 = math.tanh %198 : vector<2x32xf32>
    %200 = arith.mulf %195, %199 : vector<2x32xf32>
    %cst_26 = arith.constant dense<0.000000e+00> : vector<2x16xf32>
    %201 = tpu.matmul %200, %2, %cst_26 {dimension_numbers = #tpu.dot_dimension_numbers<[1], [0], [0], [1], [0, 0, 1, 1], [], []>} : vector<2x32xf32>, vector<32x16xf32>, vector<2x16xf32> -> vector<2x16xf32>
    %202 = vector.extract_strided_slice %8 {offsets = [0, 6], sizes = [4, 1], strides = [1, 1]} : vector<4x8xf32> to vector<4x1xf32>
    %203 = vector.shape_cast %201 : vector<2x16xf32> to vector<2x1x16xf32>
    %204 = vector.shape_cast %202 : vector<4x1xf32> to vector<1x4x1xf32>
    %205 = vector.broadcast %203 : vector<2x1x16xf32> to vector<2x4x16xf32>
    %206 = vector.broadcast %204 : vector<1x4x1xf32> to vector<2x4x16xf32>
    %207 = arith.mulf %205, %206 : vector<2x4x16xf32>
    %208 = arith.addf %180, %207 : vector<2x4x16xf32>
    %209 = vector.extract_strided_slice %11 {offsets = [0, 56], sizes = [2, 8], strides = [1, 1]} : vector<2x64xf32> to vector<2x8xf32>
    %210 = tpu.concatenate %209, %200 in 1 : vector<2x8xf32>, vector<2x32xf32> -> vector<2x40xf32>
    %cst_27 = arith.constant dense<0.000000e+00> : vector<2x128xf32>
    %211 = tpu.matmul %210, %1, %cst_27 {dimension_numbers = #tpu.dot_dimension_numbers<[1], [0], [0], [1], [0, 0, 1, 1], [], []>} : vector<2x40xf32>, vector<40x128xf32>, vector<2x128xf32> -> vector<2x128xf32>
    %212 = vector.broadcast %4 : vector<1x128xf32> to vector<2x128xf32>
    %213 = arith.addf %211, %212 : vector<2x128xf32>
    %214 = arith.negf %213 : vector<2x128xf32>
    %215 = math.exp %214 : vector<2x128xf32>
    %cst_28 = arith.constant 1.000000e+00 : f32
    %216 = vector.broadcast %cst_28 : f32 to vector<2x128xf32>
    %217 = arith.addf %216, %215 : vector<2x128xf32>
    %218 = arith.divf %216, %217 : vector<2x128xf32>
    %219 = math.tanh %213 : vector<2x128xf32>
    %220 = vector.extract_strided_slice %218 {offsets = [0, 0], sizes = [2, 32], strides = [1, 1]} : vector<2x128xf32> to vector<2x32xf32>
    %221 = vector.extract_strided_slice %218 {offsets = [0, 32], sizes = [2, 32], strides = [1, 1]} : vector<2x128xf32> to vector<2x32xf32>
    %222 = vector.extract_strided_slice %219 {offsets = [0, 64], sizes = [2, 32], strides = [1, 1]} : vector<2x128xf32> to vector<2x32xf32>
    %223 = vector.extract_strided_slice %218 {offsets = [0, 96], sizes = [2, 32], strides = [1, 1]} : vector<2x128xf32> to vector<2x32xf32>
    %224 = arith.mulf %221, %198 : vector<2x32xf32>
    %225 = arith.mulf %220, %222 : vector<2x32xf32>
    %226 = arith.addf %224, %225 : vector<2x32xf32>
    %227 = math.tanh %226 : vector<2x32xf32>
    %228 = arith.mulf %223, %227 : vector<2x32xf32>
    %cst_29 = arith.constant dense<0.000000e+00> : vector<2x16xf32>
    %229 = tpu.matmul %228, %2, %cst_29 {dimension_numbers = #tpu.dot_dimension_numbers<[1], [0], [0], [1], [0, 0, 1, 1], [], []>} : vector<2x32xf32>, vector<32x16xf32>, vector<2x16xf32> -> vector<2x16xf32>
    %230 = vector.extract_strided_slice %8 {offsets = [0, 7], sizes = [4, 1], strides = [1, 1]} : vector<4x8xf32> to vector<4x1xf32>
    %231 = vector.shape_cast %229 : vector<2x16xf32> to vector<2x1x16xf32>
    %232 = vector.shape_cast %230 : vector<4x1xf32> to vector<1x4x1xf32>
    %233 = vector.broadcast %231 : vector<2x1x16xf32> to vector<2x4x16xf32>
    %234 = vector.broadcast %232 : vector<1x4x1xf32> to vector<2x4x16xf32>
    %235 = arith.mulf %233, %234 : vector<2x4x16xf32>
    %236 = arith.addf %208, %235 : vector<2x4x16xf32>
    %237 = vector.shape_cast %7 : vector<4x16xf32> to vector<1x4x16xf32>
    %238 = vector.broadcast %237 : vector<1x4x16xf32> to vector<2x4x16xf32>
    %239 = arith.addf %236, %238 : vector<2x4x16xf32>
    %c0_30 = arith.constant 0 : index
    %c0_31 = arith.constant 0 : index
    %c0_32 = arith.constant 0 : index
    %240 = vector.load %arg4[%c0_30, %c0_31, %c0_32] : memref<2x4x16xf32, #tpu.memory_space<vmem>>, vector<2x4x16xf32>
    tpu.vector_store %arg4[%c0_30, %c0_31, %c0_32], %239 {strides = array<i32>} : memref<2x4x16xf32, #tpu.memory_space<vmem>>, vector<2x4x16xf32>,
    return
  }
  func.func @transform_0(%arg0: i32) -> (i32, i32) {
    %c0_i32 = arith.constant 0 : i32
    %c0_i32_0 = arith.constant 0 : i32
    %c0_i32_1 = arith.constant 0 : i32
    return %c0_i32, %c0_i32_0 : i32, i32
  }
  func.func @transform_1(%arg0: i32) -> (i32, i32) {
    %c0_i32 = arith.constant 0 : i32
    %c0_i32_0 = arith.constant 0 : i32
    %c0_i32_1 = arith.constant 0 : i32
    return %c0_i32, %c0_i32_0 : i32, i32
  }
  func.func @transform_2(%arg0: i32) -> (i32, i32) {
    %c0_i32 = arith.constant 0 : i32
    %c0_i32_0 = arith.constant 0 : i32
    %c0_i32_1 = arith.constant 0 : i32
    return %c0_i32, %c0_i32_0 : i32, i32
  }
  func.func @transform_3(%arg0: i32) -> (i32, i32, i32) {
    %c0_i32 = arith.constant 0 : i32
    %c0_i32_0 = arith.constant 0 : i32
    %c0_i32_1 = arith.constant 0 : i32
    %c0_i32_2 = arith.constant 0 : i32
    return %c0_i32, %c0_i32_0, %c0_i32_1 : i32, i32, i32
  }
}

</mosaic_0001>

<llo_original>
// kernel: lstm_block_forward.1
$region0: #{lstm_block_forward.1}
  #allocation0 [shape = 'u32[]', space=smem, size = 0x4, offset = 0x4, fixed_abs, tag = 'smem constant byte address 0x4 - core index']
  #allocation1 [shape = 'u32[144,128]{1,0:T(1,128)}', space=vmem, size = 0x12000, scoped, tag = 'internal scratch']
  %s0 = inlined_call_operand.vmem [shape: f32[2,64], index: 0, kind: input, shape index: {}]
  %s1 = inlined_call_operand.vmem [shape: f32[72,128], index: 1, kind: input, shape index: {}]
  %s2 = inlined_call_operand.vmem [shape: f32[8,128], index: 2, kind: input, shape index: {}]
  %s3 = inlined_call_operand.hbm [shape: f32[2,4,16], index: 3, kind: output, shape index: {}]
  %s4 = sld [smem:[#allocation0]]
  $region22: #{lstm_block_forward.1} parent=0
    _
  %s6 = ssub.s32 1, %s4
  %s7 = scalar_select 0, %s6, %s4
  $region1: #{lstm_block_forward.1} parent=0
    #allocation2 [shape = 'u8[4096]{0}', space=vmem, size = 0x1000, scoped, tag = 'output window, operand 0, single buffered']
    #allocation3 [shape = 's32[1]{0}', space=sflag, size = 0x4, scoped, tag = 'scoped memory for lstm_block_forward.1']
    %8 = vsyncpa [#allocation3], 0
    // Predicated region
    $region2: #{lstm_block_forward.1} parent=1 // pred_check
      _
    $region3: #{lstm_block_forward.1} parent=1 // pred_check_branch
      %10 = sbr.rel (0) target = $region5
    $region4: #{lstm_block_forward.1} parent=1 // pred_region
      _
    $region5: #{lstm_block_forward.1} parent=1 // pred_fallthru
      _
    // Predicated region
    $region6: #{lstm_block_forward.1} parent=1 // pred_check
      _
    $region7: #{lstm_block_forward.1} parent=1 // pred_check_branch
      %12 = sbr.rel (0) target = $region9
    $region8: #{lstm_block_forward.1} parent=1 // pred_region
      _
    $region9: #{lstm_block_forward.1} parent=1 // pred_fallthru
      _
    // Predicated region
    $region10: #{lstm_block_forward.1} parent=1 // pred_check
      _
    $region11: #{lstm_block_forward.1} parent=1 // pred_check_branch
      %14 = sbr.rel (0) target = $region13
    $region12: #{lstm_block_forward.1} parent=1 // pred_region
      _
    $region13: #{lstm_block_forward.1} parent=1 // pred_fallthru
      _
    %v15 = vld [vmem:[%s1] sm:$0xff]
    %v16 = vld [vmem:[%s1 + $0x8] sm:$0xff]
    %v17 = vld [vmem:[%s1 + $0x10] sm:$0xff]
    %v18 = vld [vmem:[%s1 + $0x18] sm:$0xff]
    %v19 = vld [vmem:[%s1 + $0x20] sm:$0xff]
    %v20 = vld [vmem:[%s1 + $0x28] sm:$0xff]
    %v21 = vld [vmem:[%s1 + $0x30] sm:$0xff]
    %v22 = vld [vmem:[%s1 + $0x38] sm:$0xff]
    %v23 = vld [vmem:[%s1 + $0x40] sm:$0xff]
    %v24 = vld [vmem:[%s2] sm:$0xff]
    %v25 = vld [vmem:[%s0] sm:$0x3]
    %v26 = vmax.f32 %v25, 0.0
    %v28 = vrot.slane %v24, 1
    %29 = vrot.lane.b32.xlu0 %v28, 8
    %v30 = vpop.permute.xlu0 %29
    %vm32 = vcmask 64512
    %v33 = vsel %vm32, %v26, %v30
    %v34 = vlaneseq
    %v35 = vshrl.u32 %v34, 7
    %v36 = vsub.s32 0, %v35
    %v37 = vrot.slane %v24, %v36
    %vm38 = vcmask 326656
    %v40 = vsel %vm38, %v33, 0
    %42 = vmatprep.subr.mxu0 0.0
    %43 = vmatpush1.msra.mxu0 %v15
    %44 = vmatprep.subr.mxu0 0.0
    %45 = vmatpush1.msra.mxu0 %v16
    %46 = vmatprep.subr.mxu0 0.0
    %47 = vmatpush1.msra.mxu0 %v17
    %48 = vmatprep.subr.mxu0 0.0
    %49 = vmatpush1.msra.mxu0 %v18
    %50 = vmatprep.subr.mxu0 0.0
    %51 = vmatpush1.msra.mxu0 %v19
    %52 = vmatprep.subr.mxu0 0.0
    %53 = vmatpush1.msra.mxu0 0.0
    %54 = vmatprep.subr.mxu0 0.0
    %55 = vmatpush1.msra.mxu0 0.0
    %56 = vmatprep.subr.mxu0 0.0
    %57 = vmatpush1.msra.mxu0 0.0
    %58 = vmatprep.subr.mxu0 0.0
    %59 = vmatpush1.msra.mxu0 0.0
    %60 = vmatprep.subr.mxu0 0.0
    %61 = vmatpush1.msra.mxu0 0.0
    %62 = vmatprep.subr.mxu0 0.0
    %63 = vmatpush1.msra.mxu0 0.0
    %64 = vmatprep.subr.mxu0 0.0
    %65 = vmatpush1.msra.mxu0 0.0
    %66 = vmatprep.subr.mxu0 0.0
    %67 = vmatpush1.msra.mxu0 0.0
    %68 = vmatprep.subr.mxu0 0.0
    %69 = vmatpush1.msra.mxu0 0.0
    %70 = vmatprep.subr.mxu0 0.0
    %71 = vmatpush1.msra.mxu0 0.0
    %72 = vmatprep.subr.mxu0 0.0
    %73 = vmatpush1.msra.mxu0 0.0
    %74 = vmatprep.subr.mxu0 0.0
    %75 = vmatpush1.msra.mxu0 0.0
    %76 = vmatprep.subr.mxu0 0.0
    %77 = vmatpush1.msra.mxu0 0.0
    %78 = vmatprep.subr.mxu0 0.0
    %79 = vmatpush1.msra.mxu0 0.0
    %80 = vmatprep.subr.mxu0 0.0
    %81 = vmatpush1.msra.mxu0 0.0
    %82 = vmatprep.subr.mxu0 0.0
    %83 = vmatpush1.msra.mxu0 0.0
    %84 = vmatprep.subr.mxu0 0.0
    %85 = vmatpush1.msra.mxu0 0.0
    %86 = vmatprep.subr.mxu0 0.0
    %87 = vmatpush1.msra.mxu0 0.0
    %88 = vmatprep.subr.mxu0 0.0
    %89 = vmatpush1.msra.mxu0 0.0
    %90 = vmatprep.subr.mxu0 0.0
    %91 = vmatpush1.msra.mxu0 0.0
    %92 = vmatprep.subr.mxu0 0.0
    %93 = vmatpush1.msra.mxu0 0.0
    %94 = vmatprep.subr.mxu0 0.0
    %95 = vmatpush1.msra.mxu0 0.0
    %96 = vmatprep.subr.mxu0 0.0
    %97 = vmatpush1.msra.mxu0 0.0
    %98 = vmatprep.subr.mxu0 0.0
    %99 = vmatpush1.msra.mxu0 0.0
    %100 = vmatprep.subr.mxu0 0.0
    %101 = vmatpush1.msra.mxu0 0.0
    %102 = vmatprep.subr.mxu0 0.0
    %103 = vmatpush1.msra.mxu0 0.0
    %104 = vmatprep.subr.mxu0 0.0
    %105 = vmatpush1.msra.mxu0 0.0
    %106 = vmatprep.mubr.f32.mxu0 0.0
    %107 = vmatmul.mubr.f32.gmra.mrb[0].mxu0 %v40
    %v108 = vpop.f32.mrb[0].mxu0
    %v109 = vadd.f32 %v37, %v108
    %v110 = vpop.f32.mrb[0].mxu0
    %111 = vdwg.mxu0
    %v112 = vxor.u32 %v109, 2147483648
    %v113 = vmul.f32 %v112, 1.442695
    %v114 = vpow.pop %v113
    %v115 = vadd.f32 %v114, 1.0
    %v116 = vrcp.pop %v115
    %v117 = vmul.f32 1.0, %v116
    %v118 = vtanh.pop %v109
    %v120 = vmul.f32 %v117, %v28
    %122 = vrot.lane.b32.xlu0 %v118, 64
    %v123 = vpop.permute.xlu0 %122
    %v125 = vmul.f32 %v117, %v123
    %127 = vrot.lane.b32.xlu0 %v125, 32
    %v128 = vpop.permute.xlu0 %127
    %v130 = vadd.f32 %v120, %v128
    %v131 = vtanh.pop %v130
    %133 = vrot.lane.b32.xlu0 %v131, 64
    %v134 = vpop.permute.xlu0 %133
    %v136 = vmul.f32 %v117, %v134
    %138 = vrot.lane.b32.xlu0 %v136, 32
    %v139 = vpop.permute.xlu0 %138
    %vm140 = vcmask 261120
    %v141 = vsel %vm140, %v139, 0
    %143 = vmatprep.subr.mxu0 0.0
    %144 = vmatpush1.msra.mxu0 %v20
    %145 = vmatprep.subr.mxu0 0.0
    %146 = vmatpush1.msra.mxu0 %v21
    %147 = vmatprep.subr.mxu0 0.0
    %148 = vmatpush1.msra.mxu0 %v22
    %149 = vmatprep.subr.mxu0 0.0
    %150 = vmatpush1.msra.mxu0 %v23
    %151 = vmatprep.subr.mxu0 0.0
    %152 = vmatpush1.msra.mxu0 0.0
    %153 = vmatprep.subr.mxu0 0.0
    %154 = vmatpush1.msra.mxu0 0.0
    %155 = vmatprep.subr.mxu0 0.0
    %156 = vmatpush1.msra.mxu0 0.0
    %157 = vmatprep.subr.mxu0 0.0
    %158 = vmatpush1.msra.mxu0 0.0
    %159 = vmatprep.subr.mxu0 0.0
    %160 = vmatpush1.msra.mxu0 0.0
    %161 = vmatprep.subr.mxu0 0.0
    %162 = vmatpush1.msra.mxu0 0.0
    %163 = vmatprep.subr.mxu0 0.0
    %164 = vmatpush1.msra.mxu0 0.0
    %165 = vmatprep.subr.mxu0 0.0
    %166 = vmatpush1.msra.mxu0 0.0
    %167 = vmatprep.subr.mxu0 0.0
    %168 = vmatpush1.msra.mxu0 0.0
    %169 = vmatprep.subr.mxu0 0.0
    %170 = vmatpush1.msra.mxu0 0.0
    %171 = vmatprep.subr.mxu0 0.0
    %172 = vmatpush1.msra.mxu0 0.0
    %173 = vmatprep.subr.mxu0 0.0
    %174 = vmatpush1.msra.mxu0 0.0
    %175 = vmatprep.subr.mxu0 0.0
    %176 = vmatpush1.msra.mxu0 0.0
    %177 = vmatprep.subr.mxu0 0.0
    %178 = vmatpush1.msra.mxu0 0.0
    %179 = vmatprep.subr.mxu0 0.0
    %180 = vmatpush1.msra.mxu0 0.0
    %181 = vmatprep.subr.mxu0 0.0
    %182 = vmatpush1.msra.mxu0 0.0
    %183 = vmatprep.subr.mxu0 0.0
    %184 = vmatpush1.msra.mxu0 0.0
    %185 = vmatprep.subr.mxu0 0.0
    %186 = vmatpush1.msra.mxu0 0.0
    %187 = vmatprep.subr.mxu0 0.0
    %188 = vmatpush1.msra.mxu0 0.0
    %189 = vmatprep.subr.mxu0 0.0
    %190 = vmatpush1.msra.mxu0 0.0
    %191 = vmatprep.subr.mxu0 0.0
    %192 = vmatpush1.msra.mxu0 0.0
    %193 = vmatprep.subr.mxu0 0.0
    %194 = vmatpush1.msra.mxu0 0.0
    %195 = vmatprep.subr.mxu0 0.0
    %196 = vmatpush1.msra.mxu0 0.0
    %197 = vmatprep.subr.mxu0 0.0
    %198 = vmatpush1.msra.mxu0 0.0
    %199 = vmatprep.subr.mxu0 0.0
    %200 = vmatpush1.msra.mxu0 0.0
    %201 = vmatprep.subr.mxu0 0.0
    %202 = vmatpush1.msra.mxu0 0.0
    %203 = vmatprep.subr.mxu0 0.0
    %204 = vmatpush1.msra.mxu0 0.0
    %205 = vmatprep.subr.mxu0 0.0
    %206 = vmatpush1.msra.mxu0 0.0
    %207 = vmatprep.mubr.f32.mxu0 0.0
    %208 = vmatmul.mubr.f32.gmra.mrb[0].mxu0 %v141
    %v209 = vpop.f32.mrb[0].mxu0
    %v210 = vadd.f32 0.0, %v209
    %v211 = vpop.f32.mrb[0].mxu0
    %212 = vdwg.mxu0
    %v215 = vunpack.c.l.s4 1966171168
    %v216 = vunpack.c.0.s8 %v215
    %v217 = vlaneseq
    %v218 = vshrl.u32 %v217, 7
    %v219 = vsub.s32 %v216, %v218
    %v220 = vrot.slane %v210, %v219
    %v221 = vcombine.high %v220, %v220
    %v223 = vunpack.c.l.s4 1966171168
    %v224 = vunpack.c.0.s8 %v223
    %v225 = vlaneseq
    %v226 = vshrl.u32 %v225, 7
    %v227 = vsub.s32 %v224, %v226
    %v228 = vrot.slane %v220, %v227
    %v230 = vunpack.c.l.s4 1966171168
    %v231 = vunpack.c.0.s8 %v230
    %v232 = vlaneseq
    %v233 = vshrl.u32 %v232, 7
    %v234 = vsub.s32 %v231, %v233
    %v235 = vrot.slane %v221, %v234
    %v236 = vlaneseq
    %v237 = vshrl.u32 %v236, 7
    %v238 = vsub.s32 0, %v237
    %v239 = vrot.slane %v228, %v238
    %v240 = vlaneseq
    %v241 = vshrl.u32 %v240, 7
    %v242 = vsub.s32 0, %v241
    %v243 = vrot.slane %v235, %v242
    %246 = vset.pattern.permute.xlu0 16
    %247 = vperm.xlu0 %246, %v24
    %v248 = vpop.permute.xlu0 %247
    %v250 = vmul.f32 %v239, %v248
    %v251 = vmul.f32 %v243, %v248
    %v252 = vadd.f32 %v250, 0.0
    %v253 = vadd.f32 %v251, 0.0
    %255 = vrot.lane.b32.xlu0 %v26, 120
    %v256 = vpop.permute.xlu0 %255
    %258 = vrot.lane.b32.xlu0 %v136, 40
    %v259 = vpop.permute.xlu0 %258
    %v261 = vsel %vm32, %v256, %v259
    %v263 = vsel %vm38, %v261, 0
    %265 = vmatprep.subr.mxu0 0.0
    %266 = vmatpush1.msra.mxu0 %v15
    %267 = vmatprep.subr.mxu0 0.0
    %268 = vmatpush1.msra.mxu0 %v16
    %269 = vmatprep.subr.mxu0 0.0
    %270 = vmatpush1.msra.mxu0 %v17
    %271 = vmatprep.subr.mxu0 0.0
    %272 = vmatpush1.msra.mxu0 %v18
    %273 = vmatprep.subr.mxu0 0.0
    %274 = vmatpush1.msra.mxu0 %v19
    %275 = vmatprep.subr.mxu0 0.0
    %276 = vmatpush1.msra.mxu0 0.0
    %277 = vmatprep.subr.mxu0 0.0
    %278 = vmatpush1.msra.mxu0 0.0
    %279 = vmatprep.subr.mxu0 0.0
    %280 = vmatpush1.msra.mxu0 0.0
    %281 = vmatprep.subr.mxu0 0.0
    %282 = vmatpush1.msra.mxu0 0.0
    %283 = vmatprep.subr.mxu0 0.0
    %284 = vmatpush1.msra.mxu0 0.0
    %285 = vmatprep.subr.mxu0 0.0
    %286 = vmatpush1.msra.mxu0 0.0
    %287 = vmatprep.subr.mxu0 0.0
    %288 = vmatpush1.msra.mxu0 0.0
    %289 = vmatprep.subr.mxu0 0.0
    %290 = vmatpush1.msra.mxu0 0.0
    %291 = vmatprep.subr.mxu0 0.0
    %292 = vmatpush1.msra.mxu0 0.0
    %293 = vmatprep.subr.mxu0 0.0
    %294 = vmatpush1.msra.mxu0 0.0
    %295 = vmatprep.subr.mxu0 0.0
    %296 = vmatpush1.msra.mxu0 0.0
    %297 = vmatprep.subr.mxu0 0.0
    %298 = vmatpush1.msra.mxu0 0.0
    %299 = vmatprep.subr.mxu0 0.0
    %300 = vmatpush1.msra.mxu0 0.0
    %301 = vmatprep.subr.mxu0 0.0
    %302 = vmatpush1.msra.mxu0 0.0
    %303 = vmatprep.subr.mxu0 0.0
    %304 = vmatpush1.msra.mxu0 0.0
    %305 = vmatprep.subr.mxu0 0.0
    %306 = vmatpush1.msra.mxu0 0.0
    %307 = vmatprep.subr.mxu0 0.0
    %308 = vmatpush1.msra.mxu0 0.0
    %309 = vmatprep.subr.mxu0 0.0
    %310 = vmatpush1.msra.mxu0 0.0
    %311 = vmatprep.subr.mxu0 0.0
    %312 = vmatpush1.msra.mxu0 0.0
    %313 = vmatprep.subr.mxu0 0.0
    %314 = vmatpush1.msra.mxu0 0.0
    %315 = vmatprep.subr.mxu0 0.0
    %316 = vmatpush1.msra.mxu0 0.0
    %317 = vmatprep.subr.mxu0 0.0
    %318 = vmatpush1.msra.mxu0 0.0
    %319 = vmatprep.subr.mxu0 0.0
    %320 = vmatpush1.msra.mxu0 0.0
    %321 = vmatprep.subr.mxu0 0.0
    %322 = vmatpush1.msra.mxu0 0.0
    %323 = vmatprep.subr.mxu0 0.0
    %324 = vmatpush1.msra.mxu0 0.0
    %325 = vmatprep.subr.mxu0 0.0
    %326 = vmatpush1.msra.mxu0 0.0
    %327 = vmatprep.subr.mxu0 0.0
    %328 = vmatpush1.msra.mxu0 0.0
    %329 = vmatprep.mubr.f32.mxu0 0.0
    %330 = vmatmul.mubr.f32.gmra.mrb[0].mxu0 %v263
    %v331 = vpop.f32.mrb[0].mxu0
    %v332 = vadd.f32 %v37, %v331
    %v333 = vpop.f32.mrb[0].mxu0
    %334 = vdwg.mxu0
    %v335 = vxor.u32 %v332, 2147483648
    %v336 = vmul.f32 %v335, 1.442695
    %v337 = vpow.pop %v336
    %v338 = vadd.f32 %v337, 1.0
    %v339 = vrcp.pop %v338
    %v340 = vmul.f32 1.0, %v339
    %v341 = vtanh.pop %v332
    %v342 = vmul.f32 %v340, %v130
    %344 = vrot.lane.b32.xlu0 %v341, 64
    %v345 = vpop.permute.xlu0 %344
    %v347 = vmul.f32 %v340, %v345
    %349 = vrot.lane.b32.xlu0 %v347, 32
    %v350 = vpop.permute.xlu0 %349
    %v352 = vadd.f32 %v342, %v350
    %v353 = vtanh.pop %v352
    %355 = vrot.lane.b32.xlu0 %v353, 64
    %v356 = vpop.permute.xlu0 %355
    %v358 = vmul.f32 %v340, %v356
    %360 = vrot.lane.b32.xlu0 %v358, 32
    %v361 = vpop.permute.xlu0 %360
    %v362 = vsel %vm140, %v361, 0
    %364 = vmatprep.subr.mxu0 0.0
    %365 = vmatpush1.msra.mxu0 %v20
    %366 = vmatprep.subr.mxu0 0.0
    %367 = vmatpush1.msra.mxu0 %v21
    %368 = vmatprep.subr.mxu0 0.0
    %369 = vmatpush1.msra.mxu0 %v22
    %370 = vmatprep.subr.mxu0 0.0
    %371 = vmatpush1.msra.mxu0 %v23
    %372 = vmatprep.subr.mxu0 0.0
    %373 = vmatpush1.msra.mxu0 0.0
    %374 = vmatprep.subr.mxu0 0.0
    %375 = vmatpush1.msra.mxu0 0.0
    %376 = vmatprep.subr.mxu0 0.0
    %377 = vmatpush1.msra.mxu0 0.0
    %378 = vmatprep.subr.mxu0 0.0
    %379 = vmatpush1.msra.mxu0 0.0
    %380 = vmatprep.subr.mxu0 0.0
    %381 = vmatpush1.msra.mxu0 0.0
    %382 = vmatprep.subr.mxu0 0.0
    %383 = vmatpush1.msra.mxu0 0.0
    %384 = vmatprep.subr.mxu0 0.0
    %385 = vmatpush1.msra.mxu0 0.0
    %386 = vmatprep.subr.mxu0 0.0
    %387 = vmatpush1.msra.mxu0 0.0
    %388 = vmatprep.subr.mxu0 0.0
    %389 = vmatpush1.msra.mxu0 0.0
    %390 = vmatprep.subr.mxu0 0.0
    %391 = vmatpush1.msra.mxu0 0.0
    %392 = vmatprep.subr.mxu0 0.0
    %393 = vmatpush1.msra.mxu0 0.0
    %394 = vmatprep.subr.mxu0 0.0
    %395 = vmatpush1.msra.mxu0 0.0
    %396 = vmatprep.subr.mxu0 0.0
    %397 = vmatpush1.msra.mxu0 0.0
    %398 = vmatprep.subr.mxu0 0.0
    %399 = vmatpush1.msra.mxu0 0.0
    %400 = vmatprep.subr.mxu0 0.0
    %401 = vmatpush1.msra.mxu0 0.0
    %402 = vmatprep.subr.mxu0 0.0
    %403 = vmatpush1.msra.mxu0 0.0
    %404 = vmatprep.subr.mxu0 0.0
    %405 = vmatpush1.msra.mxu0 0.0
    %406 = vmatprep.subr.mxu0 0.0
    %407 = vmatpush1.msra.mxu0 0.0
    %408 = vmatprep.subr.mxu0 0.0
    %409 = vmatpush1.msra.mxu0 0.0
    %410 = vmatprep.subr.mxu0 0.0
    %411 = vmatpush1.msra.mxu0 0.0
    %412 = vmatprep.subr.mxu0 0.0
    %413 = vmatpush1.msra.mxu0 0.0
    %414 = vmatprep.subr.mxu0 0.0
    %415 = vmatpush1.msra.mxu0 0.0
    %416 = vmatprep.subr.mxu0 0.0
    %417 = vmatpush1.msra.mxu0 0.0
    %418 = vmatprep.subr.mxu0 0.0
    %419 = vmatpush1.msra.mxu0 0.0
    %420 = vmatprep.subr.mxu0 0.0
    %421 = vmatpush1.msra.mxu0 0.0
    %422 = vmatprep.subr.mxu0 0.0
    %423 = vmatpush1.msra.mxu0 0.0
    %424 = vmatprep.subr.mxu0 0.0
    %425 = vmatpush1.msra.mxu0 0.0
    %426 = vmatprep.subr.mxu0 0.0
    %427 = vmatpush1.msra.mxu0 0.0
    %428 = vmatprep.mubr.f32.mxu0 0.0
    %429 = vmatmul.mubr.f32.gmra.mrb[0].mxu0 %v362
    %v430 = vpop.f32.mrb[0].mxu0
    %v431 = vadd.f32 0.0, %v430
    %v432 = vpop.f32.mrb[0].mxu0
    %433 = vdwg.mxu0
    %v436 = vunpack.c.l.s4 1966171168
    %v437 = vunpack.c.0.s8 %v436
    %v438 = vlaneseq
    %v439 = vshrl.u32 %v438, 7
    %v440 = vsub.s32 %v437, %v439
    %v441 = vrot.slane %v431, %v440
    %v442 = vcombine.high %v441, %v441
    %v444 = vunpack.c.l.s4 1966171168
    %v445 = vunpack.c.0.s8 %v444
    %v446 = vlaneseq
    %v447 = vshrl.u32 %v446, 7
    %v448 = vsub.s32 %v445, %v447
    %v449 = vrot.slane %v441, %v448
    %v451 = vunpack.c.l.s4 1966171168
    %v452 = vunpack.c.0.s8 %v451
    %v453 = vlaneseq
    %v454 = vshrl.u32 %v453, 7
    %v455 = vsub.s32 %v452, %v454
    %v456 = vrot.slane %v442, %v455
    %v457 = vlaneseq
    %v458 = vshrl.u32 %v457, 7
    %v459 = vsub.s32 0, %v458
    %v460 = vrot.slane %v449, %v459
    %v461 = vlaneseq
    %v462 = vshrl.u32 %v461, 7
    %v463 = vsub.s32 0, %v462
    %v464 = vrot.slane %v456, %v463
    %467 = vset.pattern.permute.xlu0 17
    %468 = vperm.xlu0 %467, %v24
    %v469 = vpop.permute.xlu0 %468
    %v471 = vmul.f32 %v460, %v469
    %v472 = vmul.f32 %v464, %v469
    %v473 = vadd.f32 %v252, %v471
    %v474 = vadd.f32 %v253, %v472
    %475 = vrot.lane.b32.xlu0 %v26, 112
    %v476 = vpop.permute.xlu0 %475
    %478 = vrot.lane.b32.xlu0 %v358, 40
    %v479 = vpop.permute.xlu0 %478
    %v481 = vsel %vm32, %v476, %v479
    %v483 = vsel %vm38, %v481, 0
    %485 = vmatprep.subr.mxu0 0.0
    %486 = vmatpush1.msra.mxu0 %v15
    %487 = vmatprep.subr.mxu0 0.0
    %488 = vmatpush1.msra.mxu0 %v16
    %489 = vmatprep.subr.mxu0 0.0
    %490 = vmatpush1.msra.mxu0 %v17
    %491 = vmatprep.subr.mxu0 0.0
    %492 = vmatpush1.msra.mxu0 %v18
    %493 = vmatprep.subr.mxu0 0.0
    %494 = vmatpush1.msra.mxu0 %v19
    %495 = vmatprep.subr.mxu0 0.0
    %496 = vmatpush1.msra.mxu0 0.0
    %497 = vmatprep.subr.mxu0 0.0
    %498 = vmatpush1.msra.mxu0 0.0
    %499 = vmatprep.subr.mxu0 0.0
    %500 = vmatpush1.msra.mxu0 0.0
    %501 = vmatprep.subr.mxu0 0.0
    %502 = vmatpush1.msra.mxu0 0.0
    %503 = vmatprep.subr.mxu0 0.0
    %504 = vmatpush1.msra.mxu0 0.0
    %505 = vmatprep.subr.mxu0 0.0
    %506 = vmatpush1.msra.mxu0 0.0
    %507 = vmatprep.subr.mxu0 0.0
    %508 = vmatpush1.msra.mxu0 0.0
    %509 = vmatprep.subr.mxu0 0.0
    %510 = vmatpush1.msra.mxu0 0.0
    %511 = vmatprep.subr.mxu0 0.0
    %512 = vmatpush1.msra.mxu0 0.0
    %513 = vmatprep.subr.mxu0 0.0
    %514 = vmatpush1.msra.mxu0 0.0
    %515 = vmatprep.subr.mxu0 0.0
    %516 = vmatpush1.msra.mxu0 0.0
    %517 = vmatprep.subr.mxu0 0.0
    %518 = vmatpush1.msra.mxu0 0.0
    %519 = vmatprep.subr.mxu0 0.0
    %520 = vmatpush1.msra.mxu0 0.0
    %521 = vmatprep.subr.mxu0 0.0
    %522 = vmatpush1.msra.mxu0 0.0
    %523 = vmatprep.subr.mxu0 0.0
    %524 = vmatpush1.msra.mxu0 0.0
    %525 = vmatprep.subr.mxu0 0.0
    %526 = vmatpush1.msra.mxu0 0.0
    %527 = vmatprep.subr.mxu0 0.0
    %528 = vmatpush1.msra.mxu0 0.0
    %529 = vmatprep.subr.mxu0 0.0
    %530 = vmatpush1.msra.mxu0 0.0
    %531 = vmatprep.subr.mxu0 0.0
    %532 = vmatpush1.msra.mxu0 0.0
    %533 = vmatprep.subr.mxu0 0.0
    %534 = vmatpush1.msra.mxu0 0.0
    %535 = vmatprep.subr.mxu0 0.0
    %536 = vmatpush1.msra.mxu0 0.0
    %537 = vmatprep.subr.mxu0 0.0
    %538 = vmatpush1.msra.mxu0 0.0
    %539 = vmatprep.subr.mxu0 0.0
    %540 = vmatpush1.msra.mxu0 0.0
    %541 = vmatprep.subr.mxu0 0.0
    %542 = vmatpush1.msra.mxu0 0.0
    %543 = vmatprep.subr.mxu0 0.0
    %544 = vmatpush1.msra.mxu0 0.0
    %545 = vmatprep.subr.mxu0 0.0
    %546 = vmatpush1.msra.mxu0 0.0
    %547 = vmatprep.subr.mxu0 0.0
    %548 = vmatpush1.msra.mxu0 0.0
    %549 = vmatprep.mubr.f32.mxu0 0.0
    %550 = vmatmul.mubr.f32.gmra.mrb[0].mxu0 %v483
    %v551 = vpop.f32.mrb[0].mxu0
    %v552 = vadd.f32 %v37, %v551
    %v553 = vpop.f32.mrb[0].mxu0
    %554 = vdwg.mxu0
    %v555 = vxor.u32 %v552, 2147483648
    %v556 = vmul.f32 %v555, 1.442695
    %v557 = vpow.pop %v556
    %v558 = vadd.f32 %v557, 1.0
    %v559 = vrcp.pop %v558
    %v560 = vmul.f32 1.0, %v559
    %v561 = vtanh.pop %v552
    %v562 = vmul.f32 %v560, %v352
    %564 = vrot.lane.b32.xlu0 %v561, 64
    %v565 = vpop.permute.xlu0 %564
    %v567 = vmul.f32 %v560, %v565
    %569 = vrot.lane.b32.xlu0 %v567, 32
    %v570 = vpop.permute.xlu0 %569
    %v572 = vadd.f32 %v562, %v570
    %v573 = vtanh.pop %v572
    %575 = vrot.lane.b32.xlu0 %v573, 64
    %v576 = vpop.permute.xlu0 %575
    %v578 = vmul.f32 %v560, %v576
    %580 = vrot.lane.b32.xlu0 %v578, 32
    %v581 = vpop.permute.xlu0 %580
    %v582 = vsel %vm140, %v581, 0
    %584 = vmatprep.subr.mxu0 0.0
    %585 = vmatpush1.msra.mxu0 %v20
    %586 = vmatprep.subr.mxu0 0.0
    %587 = vmatpush1.msra.mxu0 %v21
    %588 = vmatprep.subr.mxu0 0.0
    %589 = vmatpush1.msra.mxu0 %v22
    %590 = vmatprep.subr.mxu0 0.0
    %591 = vmatpush1.msra.mxu0 %v23
    %592 = vmatprep.subr.mxu0 0.0
    %593 = vmatpush1.msra.mxu0 0.0
    %594 = vmatprep.subr.mxu0 0.0
    %595 = vmatpush1.msra.mxu0 0.0
    %596 = vmatprep.subr.mxu0 0.0
    %597 = vmatpush1.msra.mxu0 0.0
    %598 = vmatprep.subr.mxu0 0.0
    %599 = vmatpush1.msra.mxu0 0.0
    %600 = vmatprep.subr.mxu0 0.0
    %601 = vmatpush1.msra.mxu0 0.0
    %602 = vmatprep.subr.mxu0 0.0
    %603 = vmatpush1.msra.mxu0 0.0
    %604 = vmatprep.subr.mxu0 0.0
    %605 = vmatpush1.msra.mxu0 0.0
    %606 = vmatprep.subr.mxu0 0.0
    %607 = vmatpush1.msra.mxu0 0.0
    %608 = vmatprep.subr.mxu0 0.0
    %609 = vmatpush1.msra.mxu0 0.0
    %610 = vmatprep.subr.mxu0 0.0
    %611 = vmatpush1.msra.mxu0 0.0
    %612 = vmatprep.subr.mxu0 0.0
    %613 = vmatpush1.msra.mxu0 0.0
    %614 = vmatprep.subr.mxu0 0.0
    %615 = vmatpush1.msra.mxu0 0.0
    %616 = vmatprep.subr.mxu0 0.0
    %617 = vmatpush1.msra.mxu0 0.0
    %618 = vmatprep.subr.mxu0 0.0
    %619 = vmatpush1.msra.mxu0 0.0
    %620 = vmatprep.subr.mxu0 0.0
    %621 = vmatpush1.msra.mxu0 0.0
    %622 = vmatprep.subr.mxu0 0.0
    %623 = vmatpush1.msra.mxu0 0.0
    %624 = vmatprep.subr.mxu0 0.0
    %625 = vmatpush1.msra.mxu0 0.0
    %626 = vmatprep.subr.mxu0 0.0
    %627 = vmatpush1.msra.mxu0 0.0
    %628 = vmatprep.subr.mxu0 0.0
    %629 = vmatpush1.msra.mxu0 0.0
    %630 = vmatprep.subr.mxu0 0.0
    %631 = vmatpush1.msra.mxu0 0.0
    %632 = vmatprep.subr.mxu0 0.0
    %633 = vmatpush1.msra.mxu0 0.0
    %634 = vmatprep.subr.mxu0 0.0
    %635 = vmatpush1.msra.mxu0 0.0
    %636 = vmatprep.subr.mxu0 0.0
    %637 = vmatpush1.msra.mxu0 0.0
    %638 = vmatprep.subr.mxu0 0.0
    %639 = vmatpush1.msra.mxu0 0.0
    %640 = vmatprep.subr.mxu0 0.0
    %641 = vmatpush1.msra.mxu0 0.0
    %642 = vmatprep.subr.mxu0 0.0
    %643 = vmatpush1.msra.mxu0 0.0
    %644 = vmatprep.subr.mxu0 0.0
    %645 = vmatpush1.msra.mxu0 0.0
    %646 = vmatprep.subr.mxu0 0.0
    %647 = vmatpush1.msra.mxu0 0.0
    %648 = vmatprep.mubr.f32.mxu0 0.0
    %649 = vmatmul.mubr.f32.gmra.mrb[0].mxu0 %v582
    %v650 = vpop.f32.mrb[0].mxu0
    %v651 = vadd.f32 0.0, %v650
    %v652 = vpop.f32.mrb[0].mxu0
    %653 = vdwg.mxu0
    %v656 = vunpack.c.l.s4 1966171168
    %v657 = vunpack.c.0.s8 %v656
    %v658 = vlaneseq
    %v659 = vshrl.u32 %v658, 7
    %v660 = vsub.s32 %v657, %v659
    %v661 = vrot.slane %v651, %v660
    %v662 = vcombine.high %v661, %v661
    %v664 = vunpack.c.l.s4 1966171168
    %v665 = vunpack.c.0.s8 %v664
    %v666 = vlaneseq
    %v667 = vshrl.u32 %v666, 7
    %v668 = vsub.s32 %v665, %v667
    %v669 = vrot.slane %v661, %v668
    %v671 = vunpack.c.l.s4 1966171168
    %v672 = vunpack.c.0.s8 %v671
    %v673 = vlaneseq
    %v674 = vshrl.u32 %v673, 7
    %v675 = vsub.s32 %v672, %v674
    %v676 = vrot.slane %v662, %v675
    %v677 = vlaneseq
    %v678 = vshrl.u32 %v677, 7
    %v679 = vsub.s32 0, %v678
    %v680 = vrot.slane %v669, %v679
    %v681 = vlaneseq
    %v682 = vshrl.u32 %v681, 7
    %v683 = vsub.s32 0, %v682
    %v684 = vrot.slane %v676, %v683
    %687 = vset.pattern.permute.xlu0 18
    %688 = vperm.xlu0 %687, %v24
    %v689 = vpop.permute.xlu0 %688
    %v691 = vmul.f32 %v680, %v689
    %v692 = vmul.f32 %v684, %v689
    %v693 = vadd.f32 %v473, %v691
    %v694 = vadd.f32 %v474, %v692
    %695 = vrot.lane.b32.xlu0 %v26, 104
    %v696 = vpop.permute.xlu0 %695
    %698 = vrot.lane.b32.xlu0 %v578, 40
    %v699 = vpop.permute.xlu0 %698
    %v701 = vsel %vm32, %v696, %v699
    %v703 = vsel %vm38, %v701, 0
    %705 = vmatprep.subr.mxu0 0.0
    %706 = vmatpush1.msra.mxu0 %v15
    %707 = vmatprep.subr.mxu0 0.0
    %708 = vmatpush1.msra.mxu0 %v16
    %709 = vmatprep.subr.mxu0 0.0
    %710 = vmatpush1.msra.mxu0 %v17
    %711 = vmatprep.subr.mxu0 0.0
    %712 = vmatpush1.msra.mxu0 %v18
    %713 = vmatprep.subr.mxu0 0.0
    %714 = vmatpush1.msra.mxu0 %v19
    %715 = vmatprep.subr.mxu0 0.0
    %716 = vmatpush1.msra.mxu0 0.0
    %717 = vmatprep.subr.mxu0 0.0
    %718 = vmatpush1.msra.mxu0 0.0
    %719 = vmatprep.subr.mxu0 0.0
    %720 = vmatpush1.msra.mxu0 0.0
    %721 = vmatprep.subr.mxu0 0.0
    %722 = vmatpush1.msra.mxu0 0.0
    %723 = vmatprep.subr.mxu0 0.0
    %724 = vmatpush1.msra.mxu0 0.0
    %725 = vmatprep.subr.mxu0 0.0
    %726 = vmatpush1.msra.mxu0 0.0
    %727 = vmatprep.subr.mxu0 0.0
    %728 = vmatpush1.msra.mxu0 0.0
    %729 = vmatprep.subr.mxu0 0.0
    %730 = vmatpush1.msra.mxu0 0.0
    %731 = vmatprep.subr.mxu0 0.0
    %732 = vmatpush1.msra.mxu0 0.0
    %733 = vmatprep.subr.mxu0 0.0
    %734 = vmatpush1.msra.mxu0 0.0
    %735 = vmatprep.subr.mxu0 0.0
    %736 = vmatpush1.msra.mxu0 0.0
    %737 = vmatprep.subr.mxu0 0.0
    %738 = vmatpush1.msra.mxu0 0.0
    %739 = vmatprep.subr.mxu0 0.0
    %740 = vmatpush1.msra.mxu0 0.0
    %741 = vmatprep.subr.mxu0 0.0
    %742 = vmatpush1.msra.mxu0 0.0
    %743 = vmatprep.subr.mxu0 0.0
    %744 = vmatpush1.msra.mxu0 0.0
    %745 = vmatprep.subr.mxu0 0.0
    %746 = vmatpush1.msra.mxu0 0.0
    %747 = vmatprep.subr.mxu0 0.0
    %748 = vmatpush1.msra.mxu0 0.0
    %749 = vmatprep.subr.mxu0 0.0
    %750 = vmatpush1.msra.mxu0 0.0
    %751 = vmatprep.subr.mxu0 0.0
    %752 = vmatpush1.msra.mxu0 0.0
    %753 = vmatprep.subr.mxu0 0.0
    %754 = vmatpush1.msra.mxu0 0.0
    %755 = vmatprep.subr.mxu0 0.0
    %756 = vmatpush1.msra.mxu0 0.0
    %757 = vmatprep.subr.mxu0 0.0
    %758 = vmatpush1.msra.mxu0 0.0
    %759 = vmatprep.subr.mxu0 0.0
    %760 = vmatpush1.msra.mxu0 0.0
    %761 = vmatprep.subr.mxu0 0.0
    %762 = vmatpush1.msra.mxu0 0.0
    %763 = vmatprep.subr.mxu0 0.0
    %764 = vmatpush1.msra.mxu0 0.0
    %765 = vmatprep.subr.mxu0 0.0
    %766 = vmatpush1.msra.mxu0 0.0
    %767 = vmatprep.subr.mxu0 0.0
    %768 = vmatpush1.msra.mxu0 0.0
    %769 = vmatprep.mubr.f32.mxu0 0.0
    %770 = vmatmul.mubr.f32.gmra.mrb[0].mxu0 %v703
    %v771 = vpop.f32.mrb[0].mxu0
    %v772 = vadd.f32 %v37, %v771
    %v773 = vpop.f32.mrb[0].mxu0
    %774 = vdwg.mxu0
    %v775 = vxor.u32 %v772, 2147483648
    %v776 = vmul.f32 %v775, 1.442695
    %v777 = vpow.pop %v776
    %v778 = vadd.f32 %v777, 1.0
    %v779 = vrcp.pop %v778
    %v780 = vmul.f32 1.0, %v779
    %v781 = vtanh.pop %v772
    %v782 = vmul.f32 %v780, %v572
    %784 = vrot.lane.b32.xlu0 %v781, 64
    %v785 = vpop.permute.xlu0 %784
    %v787 = vmul.f32 %v780, %v785
    %789 = vrot.lane.b32.xlu0 %v787, 32
    %v790 = vpop.permute.xlu0 %789
    %v792 = vadd.f32 %v782, %v790
    %v793 = vtanh.pop %v792
    %795 = vrot.lane.b32.xlu0 %v793, 64
    %v796 = vpop.permute.xlu0 %795
    %v798 = vmul.f32 %v780, %v796
    %800 = vrot.lane.b32.xlu0 %v798, 32
    %v801 = vpop.permute.xlu0 %800
    %v802 = vsel %vm140, %v801, 0
    %804 = vmatprep.subr.mxu0 0.0
    %805 = vmatpush1.msra.mxu0 %v20
    %806 = vmatprep.subr.mxu0 0.0
    %807 = vmatpush1.msra.mxu0 %v21
    %808 = vmatprep.subr.mxu0 0.0
    %809 = vmatpush1.msra.mxu0 %v22
    %810 = vmatprep.subr.mxu0 0.0
    %811 = vmatpush1.msra.mxu0 %v23
    %812 = vmatprep.subr.mxu0 0.0
    %813 = vmatpush1.msra.mxu0 0.0
    %814 = vmatprep.subr.mxu0 0.0
    %815 = vmatpush1.msra.mxu0 0.0
    %816 = vmatprep.subr.mxu0 0.0
    %817 = vmatpush1.msra.mxu0 0.0
    %818 = vmatprep.subr.mxu0 0.0
    %819 = vmatpush1.msra.mxu0 0.0
    %820 = vmatprep.subr.mxu0 0.0
    %821 = vmatpush1.msra.mxu0 0.0
    %822 = vmatprep.subr.mxu0 0.0
    %823 = vmatpush1.msra.mxu0 0.0
    %824 = vmatprep.subr.mxu0 0.0
    %825 = vmatpush1.msra.mxu0 0.0
    %826 = vmatprep.subr.mxu0 0.0
    %827 = vmatpush1.msra.mxu0 0.0
    %828 = vmatprep.subr.mxu0 0.0
    %829 = vmatpush1.msra.mxu0 0.0
    %830 = vmatprep.subr.mxu0 0.0
    %831 = vmatpush1.msra.mxu0 0.0
    %832 = vmatprep.subr.mxu0 0.0
    %833 = vmatpush1.msra.mxu0 0.0
    %834 = vmatprep.subr.mxu0 0.0
    %835 = vmatpush1.msra.mxu0 0.0
    %836 = vmatprep.subr.mxu0 0.0
    %837 = vmatpush1.msra.mxu0 0.0
    %838 = vmatprep.subr.mxu0 0.0
    %839 = vmatpush1.msra.mxu0 0.0
    %840 = vmatprep.subr.mxu0 0.0
    %841 = vmatpush1.msra.mxu0 0.0
    %842 = vmatprep.subr.mxu0 0.0
    %843 = vmatpush1.msra.mxu0 0.0
    %844 = vmatprep.subr.mxu0 0.0
    %845 = vmatpush1.msra.mxu0 0.0
    %846 = vmatprep.subr.mxu0 0.0
    %847 = vmatpush1.msra.mxu0 0.0
    %848 = vmatprep.subr.mxu0 0.0
    %849 = vmatpush1.msra.mxu0 0.0
    %850 = vmatprep.subr.mxu0 0.0
    %851 = vmatpush1.msra.mxu0 0.0
    %852 = vmatprep.subr.mxu0 0.0
    %853 = vmatpush1.msra.mxu0 0.0
    %854 = vmatprep.subr.mxu0 0.0
    %855 = vmatpush1.msra.mxu0 0.0
    %856 = vmatprep.subr.mxu0 0.0
    %857 = vmatpush1.msra.mxu0 0.0
    %858 = vmatprep.subr.mxu0 0.0
    %859 = vmatpush1.msra.mxu0 0.0
    %860 = vmatprep.subr.mxu0 0.0
    %861 = vmatpush1.msra.mxu0 0.0
    %862 = vmatprep.subr.mxu0 0.0
    %863 = vmatpush1.msra.mxu0 0.0
    %864 = vmatprep.subr.mxu0 0.0
    %865 = vmatpush1.msra.mxu0 0.0
    %866 = vmatprep.subr.mxu0 0.0
    %867 = vmatpush1.msra.mxu0 0.0
    %868 = vmatprep.mubr.f32.mxu0 0.0
    %869 = vmatmul.mubr.f32.gmra.mrb[0].mxu0 %v802
    %v870 = vpop.f32.mrb[0].mxu0
    %v871 = vadd.f32 0.0, %v870
    %v872 = vpop.f32.mrb[0].mxu0
    %873 = vdwg.mxu0
    %v876 = vunpack.c.l.s4 1966171168
    %v877 = vunpack.c.0.s8 %v876
    %v878 = vlaneseq
    %v879 = vshrl.u32 %v878, 7
    %v880 = vsub.s32 %v877, %v879
    %v881 = vrot.slane %v871, %v880
    %v882 = vcombine.high %v881, %v881
    %v884 = vunpack.c.l.s4 1966171168
    %v885 = vunpack.c.0.s8 %v884
    %v886 = vlaneseq
    %v887 = vshrl.u32 %v886, 7
    %v888 = vsub.s32 %v885, %v887
    %v889 = vrot.slane %v881, %v888
    %v891 = vunpack.c.l.s4 1966171168
    %v892 = vunpack.c.0.s8 %v891
    %v893 = vlaneseq
    %v894 = vshrl.u32 %v893, 7
    %v895 = vsub.s32 %v892, %v894
    %v896 = vrot.slane %v882, %v895
    %v897 = vlaneseq
    %v898 = vshrl.u32 %v897, 7
    %v899 = vsub.s32 0, %v898
    %v900 = vrot.slane %v889, %v899
    %v901 = vlaneseq
    %v902 = vshrl.u32 %v901, 7
    %v903 = vsub.s32 0, %v902
    %v904 = vrot.slane %v896, %v903
    %907 = vset.pattern.permute.xlu0 19
    %908 = vperm.xlu0 %907, %v24
    %v909 = vpop.permute.xlu0 %908
    %v911 = vmul.f32 %v900, %v909
    %v912 = vmul.f32 %v904, %v909
    %v913 = vadd.f32 %v693, %v911
    %v914 = vadd.f32 %v694, %v912
    %915 = vrot.lane.b32.xlu0 %v26, 96
    %v916 = vpop.permute.xlu0 %915
    %918 = vrot.lane.b32.xlu0 %v798, 40
    %v919 = vpop.permute.xlu0 %918
    %v921 = vsel %vm32, %v916, %v919
    %v923 = vsel %vm38, %v921, 0
    %925 = vmatprep.subr.mxu0 0.0
    %926 = vmatpush1.msra.mxu0 %v15
    %927 = vmatprep.subr.mxu0 0.0
    %928 = vmatpush1.msra.mxu0 %v16
    %929 = vmatprep.subr.mxu0 0.0
    %930 = vmatpush1.msra.mxu0 %v17
    %931 = vmatprep.subr.mxu0 0.0
    %932 = vmatpush1.msra.mxu0 %v18
    %933 = vmatprep.subr.mxu0 0.0
    %934 = vmatpush1.msra.mxu0 %v19
    %935 = vmatprep.subr.mxu0 0.0
    %936 = vmatpush1.msra.mxu0 0.0
    %937 = vmatprep.subr.mxu0 0.0
    %938 = vmatpush1.msra.mxu0 0.0
    %939 = vmatprep.subr.mxu0 0.0
    %940 = vmatpush1.msra.mxu0 0.0
    %941 = vmatprep.subr.mxu0 0.0
    %942 = vmatpush1.msra.mxu0 0.0
    %943 = vmatprep.subr.mxu0 0.0
    %944 = vmatpush1.msra.mxu0 0.0
    %945 = vmatprep.subr.mxu0 0.0
    %946 = vmatpush1.msra.mxu0 0.0
    %947 = vmatprep.subr.mxu0 0.0
    %948 = vmatpush1.msra.mxu0 0.0
    %949 = vmatprep.subr.mxu0 0.0
    %950 = vmatpush1.msra.mxu0 0.0
    %951 = vmatprep.subr.mxu0 0.0
    %952 = vmatpush1.msra.mxu0 0.0
    %953 = vmatprep.subr.mxu0 0.0
    %954 = vmatpush1.msra.mxu0 0.0
    %955 = vmatprep.subr.mxu0 0.0
    %956 = vmatpush1.msra.mxu0 0.0
    %957 = vmatprep.subr.mxu0 0.0
    %958 = vmatpush1.msra.mxu0 0.0
    %959 = vmatprep.subr.mxu0 0.0
    %960 = vmatpush1.msra.mxu0 0.0
    %961 = vmatprep.subr.mxu0 0.0
    %962 = vmatpush1.msra.mxu0 0.0
    %963 = vmatprep.subr.mxu0 0.0
    %964 = vmatpush1.msra.mxu0 0.0
    %965 = vmatprep.subr.mxu0 0.0
    %966 = vmatpush1.msra.mxu0 0.0
    %967 = vmatprep.subr.mxu0 0.0
    %968 = vmatpush1.msra.mxu0 0.0
    %969 = vmatprep.subr.mxu0 0.0
    %970 = vmatpush1.msra.mxu0 0.0
    %971 = vmatprep.subr.mxu0 0.0
    %972 = vmatpush1.msra.mxu0 0.0
    %973 = vmatprep.subr.mxu0 0.0
    %974 = vmatpush1.msra.mxu0 0.0
    %975 = vmatprep.subr.mxu0 0.0
    %976 = vmatpush1.msra.mxu0 0.0
    %977 = vmatprep.subr.mxu0 0.0
    %978 = vmatpush1.msra.mxu0 0.0
    %979 = vmatprep.subr.mxu0 0.0
    %980 = vmatpush1.msra.mxu0 0.0
    %981 = vmatprep.subr.mxu0 0.0
    %982 = vmatpush1.msra.mxu0 0.0
    %983 = vmatprep.subr.mxu0 0.0
    %984 = vmatpush1.msra.mxu0 0.0
    %985 = vmatprep.subr.mxu0 0.0
    %986 = vmatpush1.msra.mxu0 0.0
    %987 = vmatprep.subr.mxu0 0.0
    %988 = vmatpush1.msra.mxu0 0.0
    %989 = vmatprep.mubr.f32.mxu0 0.0
    %990 = vmatmul.mubr.f32.gmra.mrb[0].mxu0 %v923
    %v991 = vpop.f32.mrb[0].mxu0
    %v992 = vadd.f32 %v37, %v991
    %v993 = vpop.f32.mrb[0].mxu0
    %994 = vdwg.mxu0
    %v995 = vxor.u32 %v992, 2147483648
    %v996 = vmul.f32 %v995, 1.442695
    %v997 = vpow.pop %v996
    %v998 = vadd.f32 %v997, 1.0
    %v999 = vrcp.pop %v998
    %v1000 = vmul.f32 1.0, %v999
    %v1001 = vtanh.pop %v992
    %v1002 = vmul.f32 %v1000, %v792
    %1004 = vrot.lane.b32.xlu0 %v1001, 64
    %v1005 = vpop.permute.xlu0 %1004
    %v1007 = vmul.f32 %v1000, %v1005
    %1009 = vrot.lane.b32.xlu0 %v1007, 32
    %v1010 = vpop.permute.xlu0 %1009
    %v1012 = vadd.f32 %v1002, %v1010
    %v1013 = vtanh.pop %v1012
    %1015 = vrot.lane.b32.xlu0 %v1013, 64
    %v1016 = vpop.permute.xlu0 %1015
    %v1018 = vmul.f32 %v1000, %v1016
    %1020 = vrot.lane.b32.xlu0 %v1018, 32
    %v1021 = vpop.permute.xlu0 %1020
    %v1022 = vsel %vm140, %v1021, 0
    %1024 = vmatprep.subr.mxu0 0.0
    %1025 = vmatpush1.msra.mxu0 %v20
    %1026 = vmatprep.subr.mxu0 0.0
    %1027 = vmatpush1.msra.mxu0 %v21
    %1028 = vmatprep.subr.mxu0 0.0
    %1029 = vmatpush1.msra.mxu0 %v22
    %1030 = vmatprep.subr.mxu0 0.0
    %1031 = vmatpush1.msra.mxu0 %v23
    %1032 = vmatprep.subr.mxu0 0.0
    %1033 = vmatpush1.msra.mxu0 0.0
    %1034 = vmatprep.subr.mxu0 0.0
    %1035 = vmatpush1.msra.mxu0 0.0
    %1036 = vmatprep.subr.mxu0 0.0
    %1037 = vmatpush1.msra.mxu0 0.0
    %1038 = vmatprep.subr.mxu0 0.0
    %1039 = vmatpush1.msra.mxu0 0.0
    %1040 = vmatprep.subr.mxu0 0.0
    %1041 = vmatpush1.msra.mxu0 0.0
    %1042 = vmatprep.subr.mxu0 0.0
    %1043 = vmatpush1.msra.mxu0 0.0
    %1044 = vmatprep.subr.mxu0 0.0
    %1045 = vmatpush1.msra.mxu0 0.0
    %1046 = vmatprep.subr.mxu0 0.0
    %1047 = vmatpush1.msra.mxu0 0.0
    %1048 = vmatprep.subr.mxu0 0.0
    %1049 = vmatpush1.msra.mxu0 0.0
    %1050 = vmatprep.subr.mxu0 0.0
    %1051 = vmatpush1.msra.mxu0 0.0
    %1052 = vmatprep.subr.mxu0 0.0
    %1053 = vmatpush1.msra.mxu0 0.0
    %1054 = vmatprep.subr.mxu0 0.0
    %1055 = vmatpush1.msra.mxu0 0.0
    %1056 = vmatprep.subr.mxu0 0.0
    %1057 = vmatpush1.msra.mxu0 0.0
    %1058 = vmatprep.subr.mxu0 0.0
    %1059 = vmatpush1.msra.mxu0 0.0
    %1060 = vmatprep.subr.mxu0 0.0
    %1061 = vmatpush1.msra.mxu0 0.0
    %1062 = vmatprep.subr.mxu0 0.0
    %1063 = vmatpush1.msra.mxu0 0.0
    %1064 = vmatprep.subr.mxu0 0.0
    %1065 = vmatpush1.msra.mxu0 0.0
    %1066 = vmatprep.subr.mxu0 0.0
    %1067 = vmatpush1.msra.mxu0 0.0
    %1068 = vmatprep.subr.mxu0 0.0
    %1069 = vmatpush1.msra.mxu0 0.0
    %1070 = vmatprep.subr.mxu0 0.0
    %1071 = vmatpush1.msra.mxu0 0.0
    %1072 = vmatprep.subr.mxu0 0.0
    %1073 = vmatpush1.msra.mxu0 0.0
    %1074 = vmatprep.subr.mxu0 0.0
    %1075 = vmatpush1.msra.mxu0 0.0
    %1076 = vmatprep.subr.mxu0 0.0
    %1077 = vmatpush1.msra.mxu0 0.0
    %1078 = vmatprep.subr.mxu0 0.0
    %1079 = vmatpush1.msra.mxu0 0.0
    %1080 = vmatprep.subr.mxu0 0.0
    %1081 = vmatpush1.msra.mxu0 0.0
    %1082 = vmatprep.subr.mxu0 0.0
    %1083 = vmatpush1.msra.mxu0 0.0
    %1084 = vmatprep.subr.mxu0 0.0
    %1085 = vmatpush1.msra.mxu0 0.0
    %1086 = vmatprep.subr.mxu0 0.0
    %1087 = vmatpush1.msra.mxu0 0.0
    %1088 = vmatprep.mubr.f32.mxu0 0.0
    %1089 = vmatmul.mubr.f32.gmra.mrb[0].mxu0 %v1022
    %v1090 = vpop.f32.mrb[0].mxu0
    %v1091 = vadd.f32 0.0, %v1090
    %v1092 = vpop.f32.mrb[0].mxu0
    %1093 = vdwg.mxu0
    %v1096 = vunpack.c.l.s4 1966171168
    %v1097 = vunpack.c.0.s8 %v1096
    %v1098 = vlaneseq
    %v1099 = vshrl.u32 %v1098, 7
    %v1100 = vsub.s32 %v1097, %v1099
    %v1101 = vrot.slane %v1091, %v1100
    %v1102 = vcombine.high %v1101, %v1101
    %v1104 = vunpack.c.l.s4 1966171168
    %v1105 = vunpack.c.0.s8 %v1104
    %v1106 = vlaneseq
    %v1107 = vshrl.u32 %v1106, 7
    %v1108 = vsub.s32 %v1105, %v1107
    %v1109 = vrot.slane %v1101, %v1108
    %v1111 = vunpack.c.l.s4 1966171168
    %v1112 = vunpack.c.0.s8 %v1111
    %v1113 = vlaneseq
    %v1114 = vshrl.u32 %v1113, 7
    %v1115 = vsub.s32 %v1112, %v1114
    %v1116 = vrot.slane %v1102, %v1115
    %v1117 = vlaneseq
    %v1118 = vshrl.u32 %v1117, 7
    %v1119 = vsub.s32 0, %v1118
    %v1120 = vrot.slane %v1109, %v1119
    %v1121 = vlaneseq
    %v1122 = vshrl.u32 %v1121, 7
    %v1123 = vsub.s32 0, %v1122
    %v1124 = vrot.slane %v1116, %v1123
    %1127 = vset.pattern.permute.xlu0 20
    %1128 = vperm.xlu0 %1127, %v24
    %v1129 = vpop.permute.xlu0 %1128
    %v1131 = vmul.f32 %v1120, %v1129
    %v1132 = vmul.f32 %v1124, %v1129
    %v1133 = vadd.f32 %v913, %v1131
    %v1134 = vadd.f32 %v914, %v1132
    %1135 = vrot.lane.b32.xlu0 %v26, 88
    %v1136 = vpop.permute.xlu0 %1135
    %1138 = vrot.lane.b32.xlu0 %v1018, 40
    %v1139 = vpop.permute.xlu0 %1138
    %v1141 = vsel %vm32, %v1136, %v1139
    %v1143 = vsel %vm38, %v1141, 0
    %1145 = vmatprep.subr.mxu0 0.0
    %1146 = vmatpush1.msra.mxu0 %v15
    %1147 = vmatprep.subr.mxu0 0.0
    %1148 = vmatpush1.msra.mxu0 %v16
    %1149 = vmatprep.subr.mxu0 0.0
    %1150 = vmatpush1.msra.mxu0 %v17
    %1151 = vmatprep.subr.mxu0 0.0
    %1152 = vmatpush1.msra.mxu0 %v18
    %1153 = vmatprep.subr.mxu0 0.0
    %1154 = vmatpush1.msra.mxu0 %v19
    %1155 = vmatprep.subr.mxu0 0.0
    %1156 = vmatpush1.msra.mxu0 0.0
    %1157 = vmatprep.subr.mxu0 0.0
    %1158 = vmatpush1.msra.mxu0 0.0
    %1159 = vmatprep.subr.mxu0 0.0
    %1160 = vmatpush1.msra.mxu0 0.0
    %1161 = vmatprep.subr.mxu0 0.0
    %1162 = vmatpush1.msra.mxu0 0.0
    %1163 = vmatprep.subr.mxu0 0.0
    %1164 = vmatpush1.msra.mxu0 0.0
    %1165 = vmatprep.subr.mxu0 0.0
    %1166 = vmatpush1.msra.mxu0 0.0
    %1167 = vmatprep.subr.mxu0 0.0
    %1168 = vmatpush1.msra.mxu0 0.0
    %1169 = vmatprep.subr.mxu0 0.0
    %1170 = vmatpush1.msra.mxu0 0.0
    %1171 = vmatprep.subr.mxu0 0.0
    %1172 = vmatpush1.msra.mxu0 0.0
    %1173 = vmatprep.subr.mxu0 0.0
    %1174 = vmatpush1.msra.mxu0 0.0
    %1175 = vmatprep.subr.mxu0 0.0
    %1176 = vmatpush1.msra.mxu0 0.0
    %1177 = vmatprep.subr.mxu0 0.0
    %1178 = vmatpush1.msra.mxu0 0.0
    %1179 = vmatprep.subr.mxu0 0.0
    %1180 = vmatpush1.msra.mxu0 0.0
    %1181 = vmatprep.subr.mxu0 0.0
    %1182 = vmatpush1.msra.mxu0 0.0
    %1183 = vmatprep.subr.mxu0 0.0
    %1184 = vmatpush1.msra.mxu0 0.0
    %1185 = vmatprep.subr.mxu0 0.0
    %1186 = vmatpush1.msra.mxu0 0.0
    %1187 = vmatprep.subr.mxu0 0.0
    %1188 = vmatpush1.msra.mxu0 0.0
    %1189 = vmatprep.subr.mxu0 0.0
    %1190 = vmatpush1.msra.mxu0 0.0
    %1191 = vmatprep.subr.mxu0 0.0
    %1192 = vmatpush1.msra.mxu0 0.0
    %1193 = vmatprep.subr.mxu0 0.0
    %1194 = vmatpush1.msra.mxu0 0.0
    %1195 = vmatprep.subr.mxu0 0.0
    %1196 = vmatpush1.msra.mxu0 0.0
    %1197 = vmatprep.subr.mxu0 0.0
    %1198 = vmatpush1.msra.mxu0 0.0
    %1199 = vmatprep.subr.mxu0 0.0
    %1200 = vmatpush1.msra.mxu0 0.0
    %1201 = vmatprep.subr.mxu0 0.0
    %1202 = vmatpush1.msra.mxu0 0.0
    %1203 = vmatprep.subr.mxu0 0.0
    %1204 = vmatpush1.msra.mxu0 0.0
    %1205 = vmatprep.subr.mxu0 0.0
    %1206 = vmatpush1.msra.mxu0 0.0
    %1207 = vmatprep.subr.mxu0 0.0
    %1208 = vmatpush1.msra.mxu0 0.0
    %1209 = vmatprep.mubr.f32.mxu0 0.0
    %1210 = vmatmul.mubr.f32.gmra.mrb[0].mxu0 %v1143
    %v1211 = vpop.f32.mrb[0].mxu0
    %v1212 = vadd.f32 %v37, %v1211
    %v1213 = vpop.f32.mrb[0].mxu0
    %1214 = vdwg.mxu0
    %v1215 = vxor.u32 %v1212, 2147483648
    %v1216 = vmul.f32 %v1215, 1.442695
    %v1217 = vpow.pop %v1216
    %v1218 = vadd.f32 %v1217, 1.0
    %v1219 = vrcp.pop %v1218
    %v1220 = vmul.f32 1.0, %v1219
    %v1221 = vtanh.pop %v1212
    %v1222 = vmul.f32 %v1220, %v1012
    %1224 = vrot.lane.b32.xlu0 %v1221, 64
    %v1225 = vpop.permute.xlu0 %1224
    %v1227 = vmul.f32 %v1220, %v1225
    %1229 = vrot.lane.b32.xlu0 %v1227, 32
    %v1230 = vpop.permute.xlu0 %1229
    %v1232 = vadd.f32 %v1222, %v1230
    %v1233 = vtanh.pop %v1232
    %1235 = vrot.lane.b32.xlu0 %v1233, 64
    %v1236 = vpop.permute.xlu0 %1235
    %v1238 = vmul.f32 %v1220, %v1236
    %1240 = vrot.lane.b32.xlu0 %v1238, 32
    %v1241 = vpop.permute.xlu0 %1240
    %v1242 = vsel %vm140, %v1241, 0
    %1244 = vmatprep.subr.mxu0 0.0
    %1245 = vmatpush1.msra.mxu0 %v20
    %1246 = vmatprep.subr.mxu0 0.0
    %1247 = vmatpush1.msra.mxu0 %v21
    %1248 = vmatprep.subr.mxu0 0.0
    %1249 = vmatpush1.msra.mxu0 %v22
    %1250 = vmatprep.subr.mxu0 0.0
    %1251 = vmatpush1.msra.mxu0 %v23
    %1252 = vmatprep.subr.mxu0 0.0
    %1253 = vmatpush1.msra.mxu0 0.0
    %1254 = vmatprep.subr.mxu0 0.0
    %1255 = vmatpush1.msra.mxu0 0.0
    %1256 = vmatprep.subr.mxu0 0.0
    %1257 = vmatpush1.msra.mxu0 0.0
    %1258 = vmatprep.subr.mxu0 0.0
    %1259 = vmatpush1.msra.mxu0 0.0
    %1260 = vmatprep.subr.mxu0 0.0
    %1261 = vmatpush1.msra.mxu0 0.0
    %1262 = vmatprep.subr.mxu0 0.0
    %1263 = vmatpush1.msra.mxu0 0.0
    %1264 = vmatprep.subr.mxu0 0.0
    %1265 = vmatpush1.msra.mxu0 0.0
    %1266 = vmatprep.subr.mxu0 0.0
    %1267 = vmatpush1.msra.mxu0 0.0
    %1268 = vmatprep.subr.mxu0 0.0
    %1269 = vmatpush1.msra.mxu0 0.0
    %1270 = vmatprep.subr.mxu0 0.0
    %1271 = vmatpush1.msra.mxu0 0.0
    %1272 = vmatprep.subr.mxu0 0.0
    %1273 = vmatpush1.msra.mxu0 0.0
    %1274 = vmatprep.subr.mxu0 0.0
    %1275 = vmatpush1.msra.mxu0 0.0
    %1276 = vmatprep.subr.mxu0 0.0
    %1277 = vmatpush1.msra.mxu0 0.0
    %1278 = vmatprep.subr.mxu0 0.0
    %1279 = vmatpush1.msra.mxu0 0.0
    %1280 = vmatprep.subr.mxu0 0.0
    %1281 = vmatpush1.msra.mxu0 0.0
    %1282 = vmatprep.subr.mxu0 0.0
    %1283 = vmatpush1.msra.mxu0 0.0
    %1284 = vmatprep.subr.mxu0 0.0
    %1285 = vmatpush1.msra.mxu0 0.0
    %1286 = vmatprep.subr.mxu0 0.0
    %1287 = vmatpush1.msra.mxu0 0.0
    %1288 = vmatprep.subr.mxu0 0.0
    %1289 = vmatpush1.msra.mxu0 0.0
    %1290 = vmatprep.subr.mxu0 0.0
    %1291 = vmatpush1.msra.mxu0 0.0
    %1292 = vmatprep.subr.mxu0 0.0
    %1293 = vmatpush1.msra.mxu0 0.0
    %1294 = vmatprep.subr.mxu0 0.0
    %1295 = vmatpush1.msra.mxu0 0.0
    %1296 = vmatprep.subr.mxu0 0.0
    %1297 = vmatpush1.msra.mxu0 0.0
    %1298 = vmatprep.subr.mxu0 0.0
    %1299 = vmatpush1.msra.mxu0 0.0
    %1300 = vmatprep.subr.mxu0 0.0
    %1301 = vmatpush1.msra.mxu0 0.0
    %1302 = vmatprep.subr.mxu0 0.0
    %1303 = vmatpush1.msra.mxu0 0.0
    %1304 = vmatprep.subr.mxu0 0.0
    %1305 = vmatpush1.msra.mxu0 0.0
    %1306 = vmatprep.subr.mxu0 0.0
    %1307 = vmatpush1.msra.mxu0 0.0
    %1308 = vmatprep.mubr.f32.mxu0 0.0
    %1309 = vmatmul.mubr.f32.gmra.mrb[0].mxu0 %v1242
    %v1310 = vpop.f32.mrb[0].mxu0
    %v1311 = vadd.f32 0.0, %v1310
    %v1312 = vpop.f32.mrb[0].mxu0
    %1313 = vdwg.mxu0
    %v1316 = vunpack.c.l.s4 1966171168
    %v1317 = vunpack.c.0.s8 %v1316
    %v1318 = vlaneseq
    %v1319 = vshrl.u32 %v1318, 7
    %v1320 = vsub.s32 %v1317, %v1319
    %v1321 = vrot.slane %v1311, %v1320
    %v1322 = vcombine.high %v1321, %v1321
    %v1324 = vunpack.c.l.s4 1966171168
    %v1325 = vunpack.c.0.s8 %v1324
    %v1326 = vlaneseq
    %v1327 = vshrl.u32 %v1326, 7
    %v1328 = vsub.s32 %v1325, %v1327
    %v1329 = vrot.slane %v1321, %v1328
    %v1331 = vunpack.c.l.s4 1966171168
    %v1332 = vunpack.c.0.s8 %v1331
    %v1333 = vlaneseq
    %v1334 = vshrl.u32 %v1333, 7
    %v1335 = vsub.s32 %v1332, %v1334
    %v1336 = vrot.slane %v1322, %v1335
    %v1337 = vlaneseq
    %v1338 = vshrl.u32 %v1337, 7
    %v1339 = vsub.s32 0, %v1338
    %v1340 = vrot.slane %v1329, %v1339
    %v1341 = vlaneseq
    %v1342 = vshrl.u32 %v1341, 7
    %v1343 = vsub.s32 0, %v1342
    %v1344 = vrot.slane %v1336, %v1343
    %1347 = vset.pattern.permute.xlu0 21
    %1348 = vperm.xlu0 %1347, %v24
    %v1349 = vpop.permute.xlu0 %1348
    %v1351 = vmul.f32 %v1340, %v1349
    %v1352 = vmul.f32 %v1344, %v1349
    %v1353 = vadd.f32 %v1133, %v1351
    %v1354 = vadd.f32 %v1134, %v1352
    %1355 = vrot.lane.b32.xlu0 %v26, 80
    %v1356 = vpop.permute.xlu0 %1355
    %1358 = vrot.lane.b32.xlu0 %v1238, 40
    %v1359 = vpop.permute.xlu0 %1358
    %v1361 = vsel %vm32, %v1356, %v1359
    %v1363 = vsel %vm38, %v1361, 0
    %1365 = vmatprep.subr.mxu0 0.0
    %1366 = vmatpush1.msra.mxu0 %v15
    %1367 = vmatprep.subr.mxu0 0.0
    %1368 = vmatpush1.msra.mxu0 %v16
    %1369 = vmatprep.subr.mxu0 0.0
    %1370 = vmatpush1.msra.mxu0 %v17
    %1371 = vmatprep.subr.mxu0 0.0
    %1372 = vmatpush1.msra.mxu0 %v18
    %1373 = vmatprep.subr.mxu0 0.0
    %1374 = vmatpush1.msra.mxu0 %v19
    %1375 = vmatprep.subr.mxu0 0.0
    %1376 = vmatpush1.msra.mxu0 0.0
    %1377 = vmatprep.subr.mxu0 0.0
    %1378 = vmatpush1.msra.mxu0 0.0
    %1379 = vmatprep.subr.mxu0 0.0
    %1380 = vmatpush1.msra.mxu0 0.0
    %1381 = vmatprep.subr.mxu0 0.0
    %1382 = vmatpush1.msra.mxu0 0.0
    %1383 = vmatprep.subr.mxu0 0.0
    %1384 = vmatpush1.msra.mxu0 0.0
    %1385 = vmatprep.subr.mxu0 0.0
    %1386 = vmatpush1.msra.mxu0 0.0
    %1387 = vmatprep.subr.mxu0 0.0
    %1388 = vmatpush1.msra.mxu0 0.0
    %1389 = vmatprep.subr.mxu0 0.0
    %1390 = vmatpush1.msra.mxu0 0.0
    %1391 = vmatprep.subr.mxu0 0.0
    %1392 = vmatpush1.msra.mxu0 0.0
    %1393 = vmatprep.subr.mxu0 0.0
    %1394 = vmatpush1.msra.mxu0 0.0
    %1395 = vmatprep.subr.mxu0 0.0
    %1396 = vmatpush1.msra.mxu0 0.0
    %1397 = vmatprep.subr.mxu0 0.0
    %1398 = vmatpush1.msra.mxu0 0.0
    %1399 = vmatprep.subr.mxu0 0.0
    %1400 = vmatpush1.msra.mxu0 0.0
    %1401 = vmatprep.subr.mxu0 0.0
    %1402 = vmatpush1.msra.mxu0 0.0
    %1403 = vmatprep.subr.mxu0 0.0
    %1404 = vmatpush1.msra.mxu0 0.0
    %1405 = vmatprep.subr.mxu0 0.0
    %1406 = vmatpush1.msra.mxu0 0.0
    %1407 = vmatprep.subr.mxu0 0.0
    %1408 = vmatpush1.msra.mxu0 0.0
    %1409 = vmatprep.subr.mxu0 0.0
    %1410 = vmatpush1.msra.mxu0 0.0
    %1411 = vmatprep.subr.mxu0 0.0
    %1412 = vmatpush1.msra.mxu0 0.0
    %1413 = vmatprep.subr.mxu0 0.0
    %1414 = vmatpush1.msra.mxu0 0.0
    %1415 = vmatprep.subr.mxu0 0.0
    %1416 = vmatpush1.msra.mxu0 0.0
    %1417 = vmatprep.subr.mxu0 0.0
    %1418 = vmatpush1.msra.mxu0 0.0
    %1419 = vmatprep.subr.mxu0 0.0
    %1420 = vmatpush1.msra.mxu0 0.0
    %1421 = vmatprep.subr.mxu0 0.0
    %1422 = vmatpush1.msra.mxu0 0.0
    %1423 = vmatprep.subr.mxu0 0.0
    %1424 = vmatpush1.msra.mxu0 0.0
    %1425 = vmatprep.subr.mxu0 0.0
    %1426 = vmatpush1.msra.mxu0 0.0
    %1427 = vmatprep.subr.mxu0 0.0
    %1428 = vmatpush1.msra.mxu0 0.0
    %1429 = vmatprep.mubr.f32.mxu0 0.0
    %1430 = vmatmul.mubr.f32.gmra.mrb[0].mxu0 %v1363
    %v1431 = vpop.f32.mrb[0].mxu0
    %v1432 = vadd.f32 %v37, %v1431
    %v1433 = vpop.f32.mrb[0].mxu0
    %1434 = vdwg.mxu0
    %v1435 = vxor.u32 %v1432, 2147483648
    %v1436 = vmul.f32 %v1435, 1.442695
    %v1437 = vpow.pop %v1436
    %v1438 = vadd.f32 %v1437, 1.0
    %v1439 = vrcp.pop %v1438
    %v1440 = vmul.f32 1.0, %v1439
    %v1441 = vtanh.pop %v1432
    %v1442 = vmul.f32 %v1440, %v1232
    %1444 = vrot.lane.b32.xlu0 %v1441, 64
    %v1445 = vpop.permute.xlu0 %1444
    %v1447 = vmul.f32 %v1440, %v1445
    %1449 = vrot.lane.b32.xlu0 %v1447, 32
    %v1450 = vpop.permute.xlu0 %1449
    %v1452 = vadd.f32 %v1442, %v1450
    %v1453 = vtanh.pop %v1452
    %1455 = vrot.lane.b32.xlu0 %v1453, 64
    %v1456 = vpop.permute.xlu0 %1455
    %v1458 = vmul.f32 %v1440, %v1456
    %1460 = vrot.lane.b32.xlu0 %v1458, 32
    %v1461 = vpop.permute.xlu0 %1460
    %v1462 = vsel %vm140, %v1461, 0
    %1464 = vmatprep.subr.mxu0 0.0
    %1465 = vmatpush1.msra.mxu0 %v20
    %1466 = vmatprep.subr.mxu0 0.0
    %1467 = vmatpush1.msra.mxu0 %v21
    %1468 = vmatprep.subr.mxu0 0.0
    %1469 = vmatpush1.msra.mxu0 %v22
    %1470 = vmatprep.subr.mxu0 0.0
    %1471 = vmatpush1.msra.mxu0 %v23
    %1472 = vmatprep.subr.mxu0 0.0
    %1473 = vmatpush1.msra.mxu0 0.0
    %1474 = vmatprep.subr.mxu0 0.0
    %1475 = vmatpush1.msra.mxu0 0.0
    %1476 = vmatprep.subr.mxu0 0.0
    %1477 = vmatpush1.msra.mxu0 0.0
    %1478 = vmatprep.subr.mxu0 0.0
    %1479 = vmatpush1.msra.mxu0 0.0
    %1480 = vmatprep.subr.mxu0 0.0
    %1481 = vmatpush1.msra.mxu0 0.0
    %1482 = vmatprep.subr.mxu0 0.0
    %1483 = vmatpush1.msra.mxu0 0.0
    %1484 = vmatprep.subr.mxu0 0.0
    %1485 = vmatpush1.msra.mxu0 0.0
    %1486 = vmatprep.subr.mxu0 0.0
    %1487 = vmatpush1.msra.mxu0 0.0
    %1488 = vmatprep.subr.mxu0 0.0
    %1489 = vmatpush1.msra.mxu0 0.0
    %1490 = vmatprep.subr.mxu0 0.0
    %1491 = vmatpush1.msra.mxu0 0.0
    %1492 = vmatprep.subr.mxu0 0.0
    %1493 = vmatpush1.msra.mxu0 0.0
    %1494 = vmatprep.subr.mxu0 0.0
    %1495 = vmatpush1.msra.mxu0 0.0
    %1496 = vmatprep.subr.mxu0 0.0
    %1497 = vmatpush1.msra.mxu0 0.0
    %1498 = vmatprep.subr.mxu0 0.0
    %1499 = vmatpush1.msra.mxu0 0.0
    %1500 = vmatprep.subr.mxu0 0.0
    %1501 = vmatpush1.msra.mxu0 0.0
    %1502 = vmatprep.subr.mxu0 0.0
    %1503 = vmatpush1.msra.mxu0 0.0
    %1504 = vmatprep.subr.mxu0 0.0
    %1505 = vmatpush1.msra.mxu0 0.0
    %1506 = vmatprep.subr.mxu0 0.0
    %1507 = vmatpush1.msra.mxu0 0.0
    %1508 = vmatprep.subr.mxu0 0.0
    %1509 = vmatpush1.msra.mxu0 0.0
    %1510 = vmatprep.subr.mxu0 0.0
    %1511 = vmatpush1.msra.mxu0 0.0
    %1512 = vmatprep.subr.mxu0 0.0
    %1513 = vmatpush1.msra.mxu0 0.0
    %1514 = vmatprep.subr.mxu0 0.0
    %1515 = vmatpush1.msra.mxu0 0.0
    %1516 = vmatprep.subr.mxu0 0.0
    %1517 = vmatpush1.msra.mxu0 0.0
    %1518 = vmatprep.subr.mxu0 0.0
    %1519 = vmatpush1.msra.mxu0 0.0
    %1520 = vmatprep.subr.mxu0 0.0
    %1521 = vmatpush1.msra.mxu0 0.0
    %1522 = vmatprep.subr.mxu0 0.0
    %1523 = vmatpush1.msra.mxu0 0.0
    %1524 = vmatprep.subr.mxu0 0.0
    %1525 = vmatpush1.msra.mxu0 0.0
    %1526 = vmatprep.subr.mxu0 0.0
    %1527 = vmatpush1.msra.mxu0 0.0
    %1528 = vmatprep.mubr.f32.mxu0 0.0
    %1529 = vmatmul.mubr.f32.gmra.mrb[0].mxu0 %v1462
    %v1530 = vpop.f32.mrb[0].mxu0
    %v1531 = vadd.f32 0.0, %v1530
    %v1532 = vpop.f32.mrb[0].mxu0
    %1533 = vdwg.mxu0
    %v1536 = vunpack.c.l.s4 1966171168
    %v1537 = vunpack.c.0.s8 %v1536
    %v1538 = vlaneseq
    %v1539 = vshrl.u32 %v1538, 7
    %v1540 = vsub.s32 %v1537, %v1539
    %v1541 = vrot.slane %v1531, %v1540
    %v1542 = vcombine.high %v1541, %v1541
    %v1544 = vunpack.c.l.s4 1966171168
    %v1545 = vunpack.c.0.s8 %v1544
    %v1546 = vlaneseq
    %v1547 = vshrl.u32 %v1546, 7
    %v1548 = vsub.s32 %v1545, %v1547
    %v1549 = vrot.slane %v1541, %v1548
    %v1551 = vunpack.c.l.s4 1966171168
    %v1552 = vunpack.c.0.s8 %v1551
    %v1553 = vlaneseq
    %v1554 = vshrl.u32 %v1553, 7
    %v1555 = vsub.s32 %v1552, %v1554
    %v1556 = vrot.slane %v1542, %v1555
    %v1557 = vlaneseq
    %v1558 = vshrl.u32 %v1557, 7
    %v1559 = vsub.s32 0, %v1558
    %v1560 = vrot.slane %v1549, %v1559
    %v1561 = vlaneseq
    %v1562 = vshrl.u32 %v1561, 7
    %v1563 = vsub.s32 0, %v1562
    %v1564 = vrot.slane %v1556, %v1563
    %1567 = vset.pattern.permute.xlu0 22
    %1568 = vperm.xlu0 %1567, %v24
    %v1569 = vpop.permute.xlu0 %1568
    %v1571 = vmul.f32 %v1560, %v1569
    %v1572 = vmul.f32 %v1564, %v1569
    %v1573 = vadd.f32 %v1353, %v1571
    %v1574 = vadd.f32 %v1354, %v1572
    %1575 = vrot.lane.b32.xlu0 %v26, 72
    %v1576 = vpop.permute.xlu0 %1575
    %1578 = vrot.lane.b32.xlu0 %v1458, 40
    %v1579 = vpop.permute.xlu0 %1578
    %v1581 = vsel %vm32, %v1576, %v1579
    %v1583 = vsel %vm38, %v1581, 0
    %1585 = vmatprep.subr.mxu0 0.0
    %1586 = vmatpush1.msra.mxu0 %v15
    %1587 = vmatprep.subr.mxu0 0.0
    %1588 = vmatpush1.msra.mxu0 %v16
    %1589 = vmatprep.subr.mxu0 0.0
    %1590 = vmatpush1.msra.mxu0 %v17
    %1591 = vmatprep.subr.mxu0 0.0
    %1592 = vmatpush1.msra.mxu0 %v18
    %1593 = vmatprep.subr.mxu0 0.0
    %1594 = vmatpush1.msra.mxu0 %v19
    %1595 = vmatprep.subr.mxu0 0.0
    %1596 = vmatpush1.msra.mxu0 0.0
    %1597 = vmatprep.subr.mxu0 0.0
    %1598 = vmatpush1.msra.mxu0 0.0
    %1599 = vmatprep.subr.mxu0 0.0
    %1600 = vmatpush1.msra.mxu0 0.0
    %1601 = vmatprep.subr.mxu0 0.0
    %1602 = vmatpush1.msra.mxu0 0.0
    %1603 = vmatprep.subr.mxu0 0.0
    %1604 = vmatpush1.msra.mxu0 0.0
    %1605 = vmatprep.subr.mxu0 0.0
    %1606 = vmatpush1.msra.mxu0 0.0
    %1607 = vmatprep.subr.mxu0 0.0
    %1608 = vmatpush1.msra.mxu0 0.0
    %1609 = vmatprep.subr.mxu0 0.0
    %1610 = vmatpush1.msra.mxu0 0.0
    %1611 = vmatprep.subr.mxu0 0.0
    %1612 = vmatpush1.msra.mxu0 0.0
    %1613 = vmatprep.subr.mxu0 0.0
    %1614 = vmatpush1.msra.mxu0 0.0
    %1615 = vmatprep.subr.mxu0 0.0
    %1616 = vmatpush1.msra.mxu0 0.0
    %1617 = vmatprep.subr.mxu0 0.0
    %1618 = vmatpush1.msra.mxu0 0.0
    %1619 = vmatprep.subr.mxu0 0.0
    %1620 = vmatpush1.msra.mxu0 0.0
    %1621 = vmatprep.subr.mxu0 0.0
    %1622 = vmatpush1.msra.mxu0 0.0
    %1623 = vmatprep.subr.mxu0 0.0
    %1624 = vmatpush1.msra.mxu0 0.0
    %1625 = vmatprep.subr.mxu0 0.0
    %1626 = vmatpush1.msra.mxu0 0.0
    %1627 = vmatprep.subr.mxu0 0.0
    %1628 = vmatpush1.msra.mxu0 0.0
    %1629 = vmatprep.subr.mxu0 0.0
    %1630 = vmatpush1.msra.mxu0 0.0
    %1631 = vmatprep.subr.mxu0 0.0
    %1632 = vmatpush1.msra.mxu0 0.0
    %1633 = vmatprep.subr.mxu0 0.0
    %1634 = vmatpush1.msra.mxu0 0.0
    %1635 = vmatprep.subr.mxu0 0.0
    %1636 = vmatpush1.msra.mxu0 0.0
    %1637 = vmatprep.subr.mxu0 0.0
    %1638 = vmatpush1.msra.mxu0 0.0
    %1639 = vmatprep.subr.mxu0 0.0
    %1640 = vmatpush1.msra.mxu0 0.0
    %1641 = vmatprep.subr.mxu0 0.0
    %1642 = vmatpush1.msra.mxu0 0.0
    %1643 = vmatprep.subr.mxu0 0.0
    %1644 = vmatpush1.msra.mxu0 0.0
    %1645 = vmatprep.subr.mxu0 0.0
    %1646 = vmatpush1.msra.mxu0 0.0
    %1647 = vmatprep.subr.mxu0 0.0
    %1648 = vmatpush1.msra.mxu0 0.0
    %1649 = vmatprep.mubr.f32.mxu0 0.0
    %1650 = vmatmul.mubr.f32.gmra.mrb[0].mxu0 %v1583
    %v1651 = vpop.f32.mrb[0].mxu0
    %v1652 = vadd.f32 %v37, %v1651
    %v1653 = vpop.f32.mrb[0].mxu0
    %1654 = vdwg.mxu0
    %v1655 = vxor.u32 %v1652, 2147483648
    %v1656 = vmul.f32 %v1655, 1.442695
    %v1657 = vpow.pop %v1656
    %v1658 = vadd.f32 %v1657, 1.0
    %v1659 = vrcp.pop %v1658
    %v1660 = vmul.f32 1.0, %v1659
    %v1661 = vtanh.pop %v1652
    %v1662 = vmul.f32 %v1660, %v1452
    %1664 = vrot.lane.b32.xlu0 %v1661, 64
    %v1665 = vpop.permute.xlu0 %1664
    %v1667 = vmul.f32 %v1660, %v1665
    %1669 = vrot.lane.b32.xlu0 %v1667, 32
    %v1670 = vpop.permute.xlu0 %1669
    %v1672 = vadd.f32 %v1662, %v1670
    %v1673 = vtanh.pop %v1672
    %1675 = vrot.lane.b32.xlu0 %v1673, 64
    %v1676 = vpop.permute.xlu0 %1675
    %v1678 = vmul.f32 %v1660, %v1676
    %1680 = vrot.lane.b32.xlu0 %v1678, 32
    %v1681 = vpop.permute.xlu0 %1680
    %v1682 = vsel %vm140, %v1681, 0
    %1684 = vmatprep.subr.mxu0 0.0
    %1685 = vmatpush1.msra.mxu0 %v20
    %1686 = vmatprep.subr.mxu0 0.0
    %1687 = vmatpush1.msra.mxu0 %v21
    %1688 = vmatprep.subr.mxu0 0.0
    %1689 = vmatpush1.msra.mxu0 %v22
    %1690 = vmatprep.subr.mxu0 0.0
    %1691 = vmatpush1.msra.mxu0 %v23
    %1692 = vmatprep.subr.mxu0 0.0
    %1693 = vmatpush1.msra.mxu0 0.0
    %1694 = vmatprep.subr.mxu0 0.0
    %1695 = vmatpush1.msra.mxu0 0.0
    %1696 = vmatprep.subr.mxu0 0.0
    %1697 = vmatpush1.msra.mxu0 0.0
    %1698 = vmatprep.subr.mxu0 0.0
    %1699 = vmatpush1.msra.mxu0 0.0
    %1700 = vmatprep.subr.mxu0 0.0
    %1701 = vmatpush1.msra.mxu0 0.0
    %1702 = vmatprep.subr.mxu0 0.0
    %1703 = vmatpush1.msra.mxu0 0.0
    %1704 = vmatprep.subr.mxu0 0.0
    %1705 = vmatpush1.msra.mxu0 0.0
    %1706 = vmatprep.subr.mxu0 0.0
    %1707 = vmatpush1.msra.mxu0 0.0
    %1708 = vmatprep.subr.mxu0 0.0
    %1709 = vmatpush1.msra.mxu0 0.0
    %1710 = vmatprep.subr.mxu0 0.0
    %1711 = vmatpush1.msra.mxu0 0.0
    %1712 = vmatprep.subr.mxu0 0.0
    %1713 = vmatpush1.msra.mxu0 0.0
    %1714 = vmatprep.subr.mxu0 0.0
    %1715 = vmatpush1.msra.mxu0 0.0
    %1716 = vmatprep.subr.mxu0 0.0
    %1717 = vmatpush1.msra.mxu0 0.0
    %1718 = vmatprep.subr.mxu0 0.0
    %1719 = vmatpush1.msra.mxu0 0.0
    %1720 = vmatprep.subr.mxu0 0.0
    %1721 = vmatpush1.msra.mxu0 0.0
    %1722 = vmatprep.subr.mxu0 0.0
    %1723 = vmatpush1.msra.mxu0 0.0
    %1724 = vmatprep.subr.mxu0 0.0
    %1725 = vmatpush1.msra.mxu0 0.0
    %1726 = vmatprep.subr.mxu0 0.0
    %1727 = vmatpush1.msra.mxu0 0.0
    %1728 = vmatprep.subr.mxu0 0.0
    %1729 = vmatpush1.msra.mxu0 0.0
    %1730 = vmatprep.subr.mxu0 0.0
    %1731 = vmatpush1.msra.mxu0 0.0
    %1732 = vmatprep.subr.mxu0 0.0
    %1733 = vmatpush1.msra.mxu0 0.0
    %1734 = vmatprep.subr.mxu0 0.0
    %1735 = vmatpush1.msra.mxu0 0.0
    %1736 = vmatprep.subr.mxu0 0.0
    %1737 = vmatpush1.msra.mxu0 0.0
    %1738 = vmatprep.subr.mxu0 0.0
    %1739 = vmatpush1.msra.mxu0 0.0
    %1740 = vmatprep.subr.mxu0 0.0
    %1741 = vmatpush1.msra.mxu0 0.0
    %1742 = vmatprep.subr.mxu0 0.0
    %1743 = vmatpush1.msra.mxu0 0.0
    %1744 = vmatprep.subr.mxu0 0.0
    %1745 = vmatpush1.msra.mxu0 0.0
    %1746 = vmatprep.subr.mxu0 0.0
    %1747 = vmatpush1.msra.mxu0 0.0
    %1748 = vmatprep.mubr.f32.mxu0 0.0
    %1749 = vmatmul.mubr.f32.gmra.mrb[0].mxu0 %v1682
    %v1750 = vpop.f32.mrb[0].mxu0
    %v1751 = vadd.f32 0.0, %v1750
    %v1752 = vpop.f32.mrb[0].mxu0
    %1753 = vdwg.mxu0
    %v1756 = vunpack.c.l.s4 1966171168
    %v1757 = vunpack.c.0.s8 %v1756
    %v1758 = vlaneseq
    %v1759 = vshrl.u32 %v1758, 7
    %v1760 = vsub.s32 %v1757, %v1759
    %v1761 = vrot.slane %v1751, %v1760
    %v1762 = vcombine.high %v1761, %v1761
    %v1764 = vunpack.c.l.s4 1966171168
    %v1765 = vunpack.c.0.s8 %v1764
    %v1766 = vlaneseq
    %v1767 = vshrl.u32 %v1766, 7
    %v1768 = vsub.s32 %v1765, %v1767
    %v1769 = vrot.slane %v1761, %v1768
    %v1771 = vunpack.c.l.s4 1966171168
    %v1772 = vunpack.c.0.s8 %v1771
    %v1773 = vlaneseq
    %v1774 = vshrl.u32 %v1773, 7
    %v1775 = vsub.s32 %v1772, %v1774
    %v1776 = vrot.slane %v1762, %v1775
    %v1777 = vlaneseq
    %v1778 = vshrl.u32 %v1777, 7
    %v1779 = vsub.s32 0, %v1778
    %v1780 = vrot.slane %v1769, %v1779
    %v1781 = vlaneseq
    %v1782 = vshrl.u32 %v1781, 7
    %v1783 = vsub.s32 0, %v1782
    %v1784 = vrot.slane %v1776, %v1783
    %1787 = vset.pattern.permute.xlu0 23
    %1788 = vperm.xlu0 %1787, %v24
    %v1789 = vpop.permute.xlu0 %1788
    %v1791 = vmul.f32 %v1780, %v1789
    %v1792 = vmul.f32 %v1784, %v1789
    %v1793 = vadd.f32 %v1573, %v1791
    %v1794 = vadd.f32 %v1574, %v1792
    %v1795 = vadd.f32 %v1793, %v24
    %v1796 = vadd.f32 %v1794, %v24
    %vm1797 = vcmask 129027
    %1798 = vst.msk [vmem:[#allocation2 - $0x3] sm:$0x78] %vm1797, %v1795
    %1799 = vst.msk [vmem:[#allocation2 + $0x1] sm:$0x78] %vm1797, %v1796
    // Predicated region
    $region14: #{lstm_block_forward.1} parent=1 // pred_check
      _
    $region15: #{lstm_block_forward.1} parent=1 // pred_check_branch
      %1801 = sbr.rel (0) target = $region17
    $region16: #{lstm_block_forward.1} parent=1 // pred_region
      %s1803 = ssub.s32 128, 128
      %1804 = vsyncadd [#allocation3], %s1803
      %s1805 = sshll.u32 [#allocation2], 4
      %s1806 = int_to_ptr.vmem [resolvable:$true] %s1805
      %1811 = dma.vmem_to_hbm [thread:$0]  %s1806, 128, %s3, [#allocation3], 64, 64, 4
    $region17: #{lstm_block_forward.1} parent=1 // pred_fallthru
      _
    // Predicated region
    $region18: #{lstm_block_forward.1} parent=1 // pred_check
      _
    $region19: #{lstm_block_forward.1} parent=1 // pred_check_branch
      %1813 = sbr.rel (0) target = $region21
    $region20: #{lstm_block_forward.1} parent=1 // pred_region
      %1814 = dma.done [#allocation3], 128
    $region21: #{lstm_block_forward.1} parent=1 // pred_fallthru
      _
    %1815 = vsyncpa [#allocation3], 1

</llo_original>
